<compile_context>
chip_gen: v7x
topology: tpu7x:2x2x1
jax: 0.10.0
libtpu: 0.0.40
codegen_flags: <defaults>
</compile_context>

<pallas_src>
import functools

import jax
import jax.numpy as jnp
from jax.experimental import pallas as pl
from jax.experimental.pallas import tpu as pltpu


def _round_up(x, m):
    return (x + m - 1) // m * m


def _silu(x):
    # SiLU through a single EUP op:  x * sigmoid(x) == x * 0.5 * (tanh(x/2) + 1)
    return x * (0.5 * jnp.tanh(0.5 * x) + 0.5)


def _equiv_update_kernel(
    row_ref,      # [TE, 1]   int32  row ids (padded edges = -1)
    col_ref,      # [TE, 1]   int32  col ids (padded edges = -1)
    eattr_ref,    # [TE, Da]  f32    edge attributes at natural width
    cdiffT_ref,   # [8, TE]   bf16   (coord_diff * edge_mask)^T, rows 3..7 zero
    iota_ref,     # [1, Np]   int32  node index row (resident)
    tblr_ref,     # [Np, Hp]  bf16   h @ W1[:H]     (resident)
    tblc_ref,     # [Np, Hp]  bf16   h @ W1[H:2H]   (resident)
    w1e_ref,      # [Da, Hp]  f32    edge-attr rows of W1 (resident)
    b1_ref,       # [1, Hp]   f32
    w2_ref,       # [Hp, Hp]  bf16
    b2_ref,       # [1, Hp]   f32
    w3_ref,       # [1, Hp]   f32
    agg_ref,      # out [8, Np] f32  per-core partial segment-sum (xyz in rows 0..2)
    cnt_ref,      # out [1, Np] f32  per-core per-node edge counts ('mean' only)
    *,
    use_tanh,
    coords_range,
    aggregation_method,
    edges_in_d,
):
    j = pl.program_id(1)

    @pl.when(j == 0)
    def _():
        agg_ref[...] = jnp.zeros_like(agg_ref)
        cnt_ref[...] = jnp.zeros_like(cnt_ref)

    iota = iota_ref[...]                                       # [1, Np]
    row_hit = iota == row_ref[...]                             # [TE, Np] bool
    col_hit = iota == col_ref[...]
    row_hit_f = row_hit.astype(jnp.float32)                    # reused (scatter + count)
    row_hit_b = row_hit_f.astype(jnp.bfloat16)
    col_hit_b = col_hit.astype(jnp.float32).astype(jnp.bfloat16)

    # ---- layer 1: in-kernel gather of precomputed per-node halves (bf16 MXU) ----
    h1 = jnp.dot(row_hit_b, tblr_ref[...], preferred_element_type=jnp.float32)
    h1 = h1 + jnp.dot(col_hit_b, tblc_ref[...], preferred_element_type=jnp.float32)
    ea = eattr_ref[...]                                        # [TE, Da]
    w1e = w1e_ref[...]                                         # [Da, Hp]
    for c in range(edges_in_d):                                # tiny VPU outer products
        h1 = h1 + ea[:, c:c + 1] * w1e[c:c + 1, :]
    h1 = _silu(h1 + b1_ref[...])                               # [TE, Hp] f32

    # ---- layer 2 ----
    h2 = jnp.dot(h1.astype(jnp.bfloat16), w2_ref[...],
                 preferred_element_type=jnp.float32) + b2_ref[...]
    h2 = _silu(h2)

    # ---- H -> 1 projection on VPU + lane reduce (keep the MXU off a 1-col out) ----
    phi = jnp.sum(h2 * w3_ref[...], axis=1, keepdims=True)     # [TE, 1] f32
    if use_tanh:
        phi = jnp.tanh(phi) * coords_range

    # ---- segment-sum: weighted one-hot (phi folded in), bf16 MXU, f32 accum ----
    w_scatter = (row_hit_f * phi).astype(jnp.bfloat16)         # [TE, Np]
    agg_ref[...] += jnp.dot(cdiffT_ref[...], w_scatter,
                            preferred_element_type=jnp.float32)

    if aggregation_method == "mean":
        cnt_ref[...] += jnp.sum(row_hit_f, axis=0, keepdims=True)


def _vmem_estimate(te, n_p, h_p):
    streams = 2 * (3 * te * 128 * 4 + 16 * te * 2)             # row/col/eattr (lane padded) + cdiffT, x2 bufs
    resident = 2 * (2 * n_p * h_p * 2 + h_p * h_p * 2
                    + 4 * 8 * h_p * 4 + 8 * n_p * 4)           # tables, w2, small weight rows, iota
    outputs = 16 * n_p * 4                                     # resident agg + cnt blocks
    temps = 4 * te * n_p * 4 + 2 * te * h_p * 4                # hit/scatter + h1/h2
    return streams + resident + outputs + temps


def equivariant_update(
    h, coord, row, col, coord_diff, edge_attr, params,
    edge_mask=None, linker_mask=None, node_mask=None,
    *,
    use_tanh=False, coords_range=10.0,
    normalization_factor=100.0, aggregation_method="sum",
    tile_e=1024, num_cores=2,
):
    f32, bf16 = jnp.float32, jnp.bfloat16
    N, H = h.shape
    E = row.shape[0]
    Da = edge_attr.shape[1]

    h_p = _round_up(H, 128)
    n_p = _round_up(N, 128)

    te = min(tile_e, _round_up(E, 128))
    n_tiles = -(-E // te)
    nc = num_cores if n_tiles >= num_cores else 1
    tiles_per_core = -(-n_tiles // nc)
    e_p = nc * tiles_per_core * te

    # ---- per-node halves of the first edge-MLP layer (tiny, once per node) ----
    w1 = params["w1"].astype(f32)                    # [2H+Da, H]
    w1r, w1c, w1e = w1[:H], w1[H:2 * H], w1[2 * H:]
    h_b = h.astype(bf16)
    tbl_row = jnp.dot(h_b, w1r.astype(bf16), preferred_element_type=f32)
    tbl_col = jnp.dot(h_b, w1c.astype(bf16), preferred_element_type=f32)
    tbl_row = jnp.pad(tbl_row, ((0, n_p - N), (0, h_p - H))).astype(bf16)   # [Np, Hp]
    tbl_col = jnp.pad(tbl_col, ((0, n_p - N), (0, h_p - H))).astype(bf16)

    w1e_p = jnp.pad(w1e, ((0, 0), (0, h_p - H)))                            # [Da, Hp]
    b1_p = jnp.pad(params["b1"].astype(f32).reshape(1, H), ((0, 0), (0, h_p - H)))
    w2_p = jnp.pad(params["w2"].astype(f32), ((0, h_p - H), (0, h_p - H))).astype(bf16)
    b2_p = jnp.pad(params["b2"].astype(f32).reshape(1, H), ((0, 0), (0, h_p - H)))
    w3_p = jnp.pad(params["w3"].astype(f32).reshape(H, 1).T, ((0, 0), (0, h_p - H)))

    # ---- per-edge streams at natural width (no 128-column padding in HBM) ----
    row_p = jnp.pad(row.astype(jnp.int32).reshape(E, 1),
                    ((0, e_p - E), (0, 0)), constant_values=-1)
    col_p = jnp.pad(col.astype(jnp.int32).reshape(E, 1),
                    ((0, e_p - E), (0, 0)), constant_values=-1)
    ea_p = jnp.pad(edge_attr.astype(f32), ((0, e_p - E), (0, 0)))

    cd = coord_diff.astype(f32)
    if edge_mask is not None:
        cd = cd * edge_mask.astype(f32).reshape(E, 1)          # fold edge mask
    cdT = jnp.pad(cd.T, ((0, 8 - 3), (0, e_p - E))).astype(bf16)   # [8, Ep] bf16

    iota = jnp.arange(n_p, dtype=jnp.int32).reshape(1, n_p)

    kernel = functools.partial(
        _equiv_update_kernel,
        use_tanh=use_tanh,
        coords_range=float(coords_range),
        aggregation_method=aggregation_method,
        edges_in_d=Da,
    )

    def emap_rows(p, j):   # edge-tiled arrays (rows = edges)
        return (p * tiles_per_core + j, 0)

    def emap_cols(p, j):   # cdiffT (columns = edges)
        return (0, p * tiles_per_core + j)

    const = lambda p, j: (0, 0)

    grid_spec = pltpu.PrefetchScalarGridSpec(
        num_scalar_prefetch=0,
        grid=(nc, tiles_per_core),
        in_specs=[
            pl.BlockSpec((te, 1), emap_rows),        # row ids (streamed)
            pl.BlockSpec((te, 1), emap_rows),        # col ids (streamed)
            pl.BlockSpec((te, Da), emap_rows),       # edge_attr (streamed)
            pl.BlockSpec((8, te), emap_cols),        # coord_diff^T (streamed)
            pl.BlockSpec((1, n_p), const),           # node iota (resident)
            pl.BlockSpec((n_p, h_p), const),         # tbl_row (resident)
            pl.BlockSpec((n_p, h_p), const),         # tbl_col (resident)
            pl.BlockSpec((Da, h_p), const),          # w1 edge-attr rows
            pl.BlockSpec((1, h_p), const),           # b1
            pl.BlockSpec((h_p, h_p), const),         # w2
            pl.BlockSpec((1, h_p), const),           # b2
            pl.BlockSpec((1, h_p), const),           # w3 row
        ],
        out_specs=[
            pl.BlockSpec((None, 8, n_p), lambda p, j: (p, 0, 0)),   # per-core agg
            pl.BlockSpec((None, 1, n_p), lambda p, j: (p, 0, 0)),   # per-core counts
        ],
    )

    flops = 2 * e_p * (2 * n_p * h_p + h_p * h_p + 8 * n_p + h_p * (Da + 2))
    bytes_accessed = ((row_p.size + col_p.size + ea_p.size + iota.size) * 4
                      + cdT.size * 2
                      + (tbl_row.size + tbl_col.size + w2_p.size) * 2
                      + (w1e_p.size + b1_p.size + b2_p.size + w3_p.size) * 4
                      + (nc * 8 * n_p + nc * n_p) * 4)
    cost = pl.CostEstimate(
        flops=int(flops),
        transcendentals=int(2 * e_p * h_p + (e_p if use_tanh else 0)),
        bytes_accessed=int(bytes_accessed))

    vmem_limit = int(min(max(2 * _vmem_estimate(te, n_p, h_p), 8 * 1024 * 1024),
                         32 * 1024 * 1024))

    aggT, cntT = pl.pallas_call(
        kernel,
        out_shape=(jax.ShapeDtypeStruct((nc, 8, n_p), f32),
                   jax.ShapeDtypeStruct((nc, 1, n_p), f32)),
        grid_spec=grid_spec,
        compiler_params=pltpu.CompilerParams(
            dimension_semantics=("parallel", "arbitrary"),   # core split x edge reduction
            vmem_limit_bytes=vmem_limit),
        cost_estimate=cost,
    )(row_p, col_p, ea_p, cdT, iota,
      tbl_row, tbl_col, w1e_p, b1_p, w2_p, b2_p, w3_p)

    # ---- combine per-core partials + finalize on tiny [N, 3] arrays ----
    agg = aggT.sum(axis=0)[:3, :N].T                           # [N, 3]
    if aggregation_method == "sum":
        agg = agg / normalization_factor
    else:  # "mean"
        cnt = cntT.sum(axis=0)[0, :N].reshape(N, 1)
        agg = agg / jnp.where(cnt == 0.0, 1.0, cnt)
    if linker_mask is not None:
        agg = agg * linker_mask.astype(f32).reshape(N, 1)
    out = coord.astype(f32) + agg
    if node_mask is not None:
        out = out * node_mask.astype(f32).reshape(N, 1)
    return out


def init_params(key, hidden_nf, edges_in_d=1):
    """Synthetic init matching EquivariantUpdate's parameter shapes.
    Weights stored as [in, out] (kernel computes x @ W)."""
    din = 2 * hidden_nf + edges_in_d
    k1, k2, k3, k4, k5 = jax.random.split(key, 5)

    def uni(k, shape, bound):
        return jax.random.uniform(k, shape, jnp.float32, -bound, bound)

    w1 = uni(k1, (din, hidden_nf), 1.0 / (din ** 0.5))
    b1 = uni(k2, (1, hidden_nf), 1.0 / (din ** 0.5))
    w2 = uni(k3, (hidden_nf, hidden_nf), 1.0 / (hidden_nf ** 0.5))
    b2 = uni(k4, (1, hidden_nf), 1.0 / (hidden_nf ** 0.5))
    xb = 0.001 * (6.0 / (hidden_nf + 1)) ** 0.5              # xavier_uniform_(gain=0.001)
    w3 = uni(k5, (hidden_nf, 1), xb)
    return {"w1": w1, "b1": b1, "w2": w2, "b2": b2, "w3": w3}


def _reference(h, coord, row, col, coord_diff, edge_attr, params,
               edge_mask, linker_mask, node_mask,
               use_tanh, coords_range, normalization_factor, aggregation_method):
    """Pure-JAX reference mirroring the kernel's bf16 matmul precision."""
    f32, bf16 = jnp.float32, jnp.bfloat16
    H = h.shape[1]
    w1 = params["w1"].astype(f32)
    w1r, w1c, w1e = w1[:H], w1[H:2 * H], w1[2 * H:]
    h_b = h.astype(bf16)
    tr = jnp.dot(h_b, w1r.astype(bf16), preferred_element_type=f32).astype(bf16).astype(f32)
    tc = jnp.dot(h_b, w1c.astype(bf16), preferred_element_type=f32).astype(bf16).astype(f32)
    h1 = tr[row] + tc[col] + edge_attr.astype(f32) @ w1e + params["b1"].reshape(1, H)
    h1 = h1 * jax.nn.sigmoid(h1)
    h2 = jnp.dot(h1.astype(bf16), params["w2"].astype(bf16),
                 preferred_element_type=f32) + params["b2"].reshape(1, H)
    h2 = h2 * jax.nn.sigmoid(h2)
    phi = h2 @ params["w3"].reshape(H, 1)
    if use_tanh:
        phi = jnp.tanh(phi) * coords_range
    cd = coord_diff.astype(f32)
    if edge_mask is not None:
        cd = cd * edge_mask.reshape(-1, 1)
    trans = cd.astype(bf16).astype(f32) * phi.astype(bf16).astype(f32)
    agg = jnp.zeros((coord.shape[0], 3), f32).at[row].add(trans)
    if aggregation_method == "sum":
        agg = agg / normalization_factor
    else:
        cnt = jnp.zeros((coord.shape[0], 1), f32).at[row].add(1.0)
        agg = agg / jnp.where(cnt == 0, 1.0, cnt)
    if linker_mask is not None:
        agg = agg * linker_mask.reshape(-1, 1)
    out = coord + agg
    if node_mask is not None:
        out = out * node_mask.reshape(-1, 1)
    return out


if __name__ == "__main__":
    hidden_nf = 32
    edges_in_d = 2                    # EGNN feeds [distance, edge_attr] -> width 2
    bs, n_nodes = 2, 12
    N = bs * n_nodes                  # 24 nodes
    E = bs * n_nodes * n_nodes        # 288 fully-connected edges (as Dynamics.get_edges)

    key = jax.random.PRNGKey(0)
    kp, kh, kc, ka, km1, km2, km3 = jax.random.split(key, 7)

    params = init_params(kp, hidden_nf, edges_in_d)

    h = jax.random.normal(kh, (N, hidden_nf), jnp.float32)
    coord = jax.random.normal(kc, (N, 3), jnp.float32)

    # Fully-connected per-batch edge index, as in Dynamics.get_edges.
    idx = jnp.arange(n_nodes, dtype=jnp.int32)
    rr = jnp.repeat(idx, n_nodes)
    cc = jnp.tile(idx, n_nodes)
    offs = (jnp.arange(bs, dtype=jnp.int32) * n_nodes)[:, None]
    row = (rr[None, :] + offs).reshape(-1)
    col = (cc[None, :] + offs).reshape(-1)

    # coord2diff (norm_constant=1)
    diff = coord[row] - coord[col]
    radial = jnp.sum(diff ** 2, axis=1, keepdims=True)
    coord_diff = diff / (jnp.sqrt(radial + 1e-8) + 1.0)

    edge_attr = jnp.concatenate(
        [radial, jax.random.normal(ka, (E, edges_in_d - 1), jnp.float32)], axis=1)

    edge_mask = (jax.random.uniform(km1, (E, 1)) > 0.2).astype(jnp.float32)
    linker_mask = (jax.random.uniform(km2, (N, 1)) > 0.2).astype(jnp.float32)
    node_mask = (jax.random.uniform(km3, (N, 1)) > 0.1).astype(jnp.float32)

    # Config 1: sum aggregation, no tanh, all masks, 3 edge tiles over the 2-way
    #           core split (exercises cross-tile accumulation + padded-edge exclusion).
    # Config 2: mean aggregation, tanh, no linker mask, single tile / single-core path.
    configs = [
        dict(use_tanh=False, aggregation_method="mean" == "x" and "sum" or "sum",
             linker_mask=linker_mask, tile_e=128),
        dict(use_tanh=True, aggregation_method="mean",
             linker_mask=None, tile_e=384),
    ]
    for cfg in configs:
        out = equivariant_update(
            h, coord, row, col, coord_diff, edge_attr, params,
            edge_mask=edge_mask, linker_mask=cfg["linker_mask"], node_mask=node_mask,
            use_tanh=cfg["use_tanh"], coords_range=10.0,
            normalization_factor=100.0, aggregation_method=cfg["aggregation_method"],
            tile_e=cfg["tile_e"])
        out = jax.block_until_ready(out)

        ref = _reference(h, coord, row, col, coord_diff, edge_attr, params,
                         edge_mask, cfg["linker_mask"], node_mask,
                         cfg["use_tanh"], 10.0, 100.0, cfg["aggregation_method"])
        assert out.shape == (N, 3)
        err = float(jnp.max(jnp.abs(out - ref)))
        assert jnp.allclose(out, ref, atol=1e-3, rtol=1e-3), (
            f"mismatch vs reference ({cfg['aggregation_method']}, tanh={cfg['use_tanh']}): "
            f"max abs err {err}")

    print("KERNEL_OK")
</pallas_src>

<mosaic_0001>
module attributes {stable_mosaic.version = 11 : i64} {
  func.func @_equiv_update_kernel(%arg0: i32, %arg1: i32, %arg2: memref<128x1xi32, #tpu.memory_space<vmem>>, %arg3: memref<128x1xi32, #tpu.memory_space<vmem>>, %arg4: memref<128x2xf32, #tpu.memory_space<vmem>>, %arg5: memref<8x128xbf16, #tpu.memory_space<vmem>>, %arg6: memref<1x128xi32, #tpu.memory_space<vmem>>, %arg7: memref<128x128xbf16, #tpu.memory_space<vmem>>, %arg8: memref<128x128xbf16, #tpu.memory_space<vmem>>, %arg9: memref<2x128xf32, #tpu.memory_space<vmem>>, %arg10: memref<1x128xf32, #tpu.memory_space<vmem>>, %arg11: memref<128x128xbf16, #tpu.memory_space<vmem>>, %arg12: memref<1x128xf32, #tpu.memory_space<vmem>>, %arg13: memref<1x128xf32, #tpu.memory_space<vmem>>, %arg14: memref<1x8x128xf32, #tpu.memory_space<vmem>>, %arg15: memref<1x1x128xf32, #tpu.memory_space<vmem>>) attributes {dimension_semantics = [#tpu.dimension_semantics<parallel>, #tpu.dimension_semantics<arbitrary>], iteration_bounds = array<i64: 2, 2>, scalar_prefetch = 0 : i64, scratch_operands = 0 : i64, tpu.core_type = #tpu.core_type<tc>, window_params = [{transform_indices = @transform_0, window_bounds = array<i64: 128, 1>}, {transform_indices = @transform_1, window_bounds = array<i64: 128, 1>}, {transform_indices = @transform_2, window_bounds = array<i64: 128, 2>}, {transform_indices = @transform_3, window_bounds = array<i64: 8, 128>}, {pipeline_mode = #tpu.pipeline_mode<synchronous>, transform_indices = @transform_4, window_bounds = array<i64: 1, 128>}, {pipeline_mode = #tpu.pipeline_mode<synchronous>, transform_indices = @transform_5, window_bounds = array<i64: 128, 128>}, {pipeline_mode = #tpu.pipeline_mode<synchronous>, transform_indices = @transform_6, window_bounds = array<i64: 128, 128>}, {pipeline_mode = #tpu.pipeline_mode<synchronous>, transform_indices = @transform_7, window_bounds = array<i64: 2, 128>}, {pipeline_mode = #tpu.pipeline_mode<synchronous>, transform_indices = @transform_8, window_bounds = array<i64: 1, 128>}, {pipeline_mode = #tpu.pipeline_mode<synchronous>, transform_indices = @transform_9, window_bounds = array<i64: 128, 128>}, {pipeline_mode = #tpu.pipeline_mode<synchronous>, transform_indices = @transform_10, window_bounds = array<i64: 1, 128>}, {pipeline_mode = #tpu.pipeline_mode<synchronous>, transform_indices = @transform_11, window_bounds = array<i64: 1, 128>}, {transform_indices = @transform_12, window_bounds = array<i64: 1, 8, 128>}, {transform_indices = @transform_13, window_bounds = array<i64: 1, 1, 128>}]} {
    %c0_i32 = arith.constant 0 : i32
    %0 = arith.cmpi eq, %arg1, %c0_i32 : i32
    %1 = arith.extui %0 : i1 to i32
    %c0_i32_0 = arith.constant 0 : i32
    %2 = arith.cmpi ne, %1, %c0_i32_0 : i32
    scf.if %2 {
      %cst_40 = arith.constant 0.000000e+00 : f32
      %78 = vector.broadcast %cst_40 : f32 to vector<8x128xf32>
      %c0_41 = arith.constant 0 : index
      %c0_42 = arith.constant 0 : index
      %c0_43 = arith.constant 0 : index
      %79 = vector.load %arg14[%c0_41, %c0_42, %c0_43] : memref<1x8x128xf32, #tpu.memory_space<vmem>>, vector<1x8x128xf32>
      %80 = vector.shape_cast %79 : vector<1x8x128xf32> to vector<8x128xf32>
      %81 = vector.shape_cast %78 : vector<8x128xf32> to vector<1x8x128xf32>
      tpu.vector_store %arg14[%c0_41, %c0_42, %c0_43], %81 {strides = array<i32>} : memref<1x8x128xf32, #tpu.memory_space<vmem>>, vector<1x8x128xf32>,
      %cst_44 = arith.constant 0.000000e+00 : f32
      %82 = vector.broadcast %cst_44 : f32 to vector<1x128xf32>
      %c0_45 = arith.constant 0 : index
      %c0_46 = arith.constant 0 : index
      %c0_47 = arith.constant 0 : index
      %83 = vector.load %arg15[%c0_45, %c0_46, %c0_47] : memref<1x1x128xf32, #tpu.memory_space<vmem>>, vector<1x1x128xf32>
      %84 = vector.shape_cast %83 : vector<1x1x128xf32> to vector<1x128xf32>
      %85 = vector.shape_cast %82 : vector<1x128xf32> to vector<1x1x128xf32>
      tpu.vector_store %arg15[%c0_45, %c0_46, %c0_47], %85 {strides = array<i32>} : memref<1x1x128xf32, #tpu.memory_space<vmem>>, vector<1x1x128xf32>,
    } else {
    }
    %c0 = arith.constant 0 : index
    %c0_1 = arith.constant 0 : index
    %3 = vector.load %arg6[%c0, %c0_1] : memref<1x128xi32, #tpu.memory_space<vmem>>, vector<1x128xi32>
    %c0_2 = arith.constant 0 : index
    %c0_3 = arith.constant 0 : index
    %4 = vector.load %arg2[%c0_2, %c0_3] : memref<128x1xi32, #tpu.memory_space<vmem>>, vector<128x1xi32>
    %5 = vector.broadcast %3 : vector<1x128xi32> to vector<128x128xi32>
    %6 = vector.broadcast %4 : vector<128x1xi32> to vector<128x128xi32>
    %7 = arith.cmpi eq, %5, %6 : vector<128x128xi32>
    %c0_4 = arith.constant 0 : index
    %c0_5 = arith.constant 0 : index
    %8 = vector.load %arg3[%c0_4, %c0_5] : memref<128x1xi32, #tpu.memory_space<vmem>>, vector<128x1xi32>
    %9 = vector.broadcast %3 : vector<1x128xi32> to vector<128x128xi32>
    %10 = vector.broadcast %8 : vector<128x1xi32> to vector<128x128xi32>
    %11 = arith.cmpi eq, %9, %10 : vector<128x128xi32>
    %12 = arith.extui %7 : vector<128x128xi1> to vector<128x128xi32>
    %13 = arith.sitofp %12 : vector<128x128xi32> to vector<128x128xf32>
    %14 = arith.truncf %13 : vector<128x128xf32> to vector<128x128xbf16>
    %15 = arith.extui %11 : vector<128x128xi1> to vector<128x128xi32>
    %16 = arith.sitofp %15 : vector<128x128xi32> to vector<128x128xf32>
    %17 = arith.truncf %16 : vector<128x128xf32> to vector<128x128xbf16>
    %c0_6 = arith.constant 0 : index
    %c0_7 = arith.constant 0 : index
    %18 = vector.load %arg7[%c0_6, %c0_7] : memref<128x128xbf16, #tpu.memory_space<vmem>>, vector<128x128xbf16>
    %cst = arith.constant dense<0.000000e+00> : vector<128x128xf32>
    %19 = tpu.matmul %14, %18, %cst {dimension_numbers = #tpu.dot_dimension_numbers<[1], [0], [0], [1], [0, 0, 1, 1], [], []>} : vector<128x128xbf16>, vector<128x128xbf16>, vector<128x128xf32> -> vector<128x128xf32>
    %c0_8 = arith.constant 0 : index
    %c0_9 = arith.constant 0 : index
    %20 = vector.load %arg8[%c0_8, %c0_9] : memref<128x128xbf16, #tpu.memory_space<vmem>>, vector<128x128xbf16>
    %cst_10 = arith.constant dense<0.000000e+00> : vector<128x128xf32>
    %21 = tpu.matmul %17, %20, %cst_10 {dimension_numbers = #tpu.dot_dimension_numbers<[1], [0], [0], [1], [0, 0, 1, 1], [], []>} : vector<128x128xbf16>, vector<128x128xbf16>, vector<128x128xf32> -> vector<128x128xf32>
    %22 = arith.addf %19, %21 : vector<128x128xf32>
    %c0_11 = arith.constant 0 : index
    %c0_12 = arith.constant 0 : index
    %23 = vector.load %arg4[%c0_11, %c0_12] : memref<128x2xf32, #tpu.memory_space<vmem>>, vector<128x2xf32>
    %c0_13 = arith.constant 0 : index
    %c0_14 = arith.constant 0 : index
    %24 = vector.load %arg9[%c0_13, %c0_14] : memref<2x128xf32, #tpu.memory_space<vmem>>, vector<2x128xf32>
    %25 = vector.extract_strided_slice %23 {offsets = [0, 0], sizes = [128, 1], strides = [1, 1]} : vector<128x2xf32> to vector<128x1xf32>
    %26 = vector.extract_strided_slice %24 {offsets = [0, 0], sizes = [1, 128], strides = [1, 1]} : vector<2x128xf32> to vector<1x128xf32>
    %27 = vector.broadcast %25 : vector<128x1xf32> to vector<128x128xf32>
    %28 = vector.broadcast %26 : vector<1x128xf32> to vector<128x128xf32>
    %29 = arith.mulf %27, %28 : vector<128x128xf32>
    %30 = arith.addf %22, %29 : vector<128x128xf32>
    %31 = vector.extract_strided_slice %23 {offsets = [0, 1], sizes = [128, 1], strides = [1, 1]} : vector<128x2xf32> to vector<128x1xf32>
    %32 = vector.extract_strided_slice %24 {offsets = [1, 0], sizes = [1, 128], strides = [1, 1]} : vector<2x128xf32> to vector<1x128xf32>
    %33 = vector.broadcast %31 : vector<128x1xf32> to vector<128x128xf32>
    %34 = vector.broadcast %32 : vector<1x128xf32> to vector<128x128xf32>
    %35 = arith.mulf %33, %34 : vector<128x128xf32>
    %36 = arith.addf %30, %35 : vector<128x128xf32>
    %c0_15 = arith.constant 0 : index
    %c0_16 = arith.constant 0 : index
    %37 = vector.load %arg10[%c0_15, %c0_16] : memref<1x128xf32, #tpu.memory_space<vmem>>, vector<1x128xf32>
    %38 = vector.broadcast %37 : vector<1x128xf32> to vector<128x128xf32>
    %39 = arith.addf %36, %38 : vector<128x128xf32>
    %cst_17 = arith.constant 5.000000e-01 : f32
    %40 = vector.broadcast %cst_17 : f32 to vector<128x128xf32>
    %41 = arith.mulf %40, %39 : vector<128x128xf32>
    %42 = math.tanh %41 : vector<128x128xf32>
    %cst_18 = arith.constant 5.000000e-01 : f32
    %43 = vector.broadcast %cst_18 : f32 to vector<128x128xf32>
    %44 = arith.mulf %43, %42 : vector<128x128xf32>
    %cst_19 = arith.constant 5.000000e-01 : f32
    %45 = vector.broadcast %cst_19 : f32 to vector<128x128xf32>
    %46 = arith.addf %44, %45 : vector<128x128xf32>
    %47 = arith.mulf %39, %46 : vector<128x128xf32>
    %48 = arith.truncf %47 : vector<128x128xf32> to vector<128x128xbf16>
    %c0_20 = arith.constant 0 : index
    %c0_21 = arith.constant 0 : index
    %49 = vector.load %arg11[%c0_20, %c0_21] : memref<128x128xbf16, #tpu.memory_space<vmem>>, vector<128x128xbf16>
    %cst_22 = arith.constant dense<0.000000e+00> : vector<128x128xf32>
    %50 = tpu.matmul %48, %49, %cst_22 {dimension_numbers = #tpu.dot_dimension_numbers<[1], [0], [0], [1], [0, 0, 1, 1], [], []>} : vector<128x128xbf16>, vector<128x128xbf16>, vector<128x128xf32> -> vector<128x128xf32>
    %c0_23 = arith.constant 0 : index
    %c0_24 = arith.constant 0 : index
    %51 = vector.load %arg12[%c0_23, %c0_24] : memref<1x128xf32, #tpu.memory_space<vmem>>, vector<1x128xf32>
    %52 = vector.broadcast %51 : vector<1x128xf32> to vector<128x128xf32>
    %53 = arith.addf %50, %52 : vector<128x128xf32>
    %cst_25 = arith.constant 5.000000e-01 : f32
    %54 = vector.broadcast %cst_25 : f32 to vector<128x128xf32>
    %55 = arith.mulf %54, %53 : vector<128x128xf32>
    %56 = math.tanh %55 : vector<128x128xf32>
    %cst_26 = arith.constant 5.000000e-01 : f32
    %57 = vector.broadcast %cst_26 : f32 to vector<128x128xf32>
    %58 = arith.mulf %57, %56 : vector<128x128xf32>
    %cst_27 = arith.constant 5.000000e-01 : f32
    %59 = vector.broadcast %cst_27 : f32 to vector<128x128xf32>
    %60 = arith.addf %58, %59 : vector<128x128xf32>
    %61 = arith.mulf %53, %60 : vector<128x128xf32>
    %c0_28 = arith.constant 0 : index
    %c0_29 = arith.constant 0 : index
    %62 = vector.load %arg13[%c0_28, %c0_29] : memref<1x128xf32, #tpu.memory_space<vmem>>, vector<1x128xf32>
    %63 = vector.broadcast %62 : vector<1x128xf32> to vector<128x128xf32>
    %64 = arith.mulf %61, %63 : vector<128x128xf32>
    %cst_30 = arith.constant dense<0.000000e+00> : vector<128xf32>
    %65 = vector.multi_reduction <add>, %64, %cst_30 [1] : vector<128x128xf32> to vector<128xf32>
    %66 = vector.shape_cast %65 : vector<128xf32> to vector<128x1xf32>
    %67 = vector.broadcast %66 : vector<128x1xf32> to vector<128x128xf32>
    %68 = arith.mulf %13, %67 : vector<128x128xf32>
    %69 = arith.truncf %68 : vector<128x128xf32> to vector<128x128xbf16>
    %c0_31 = arith.constant 0 : index
    %c0_32 = arith.constant 0 : index
    %c0_33 = arith.constant 0 : index
    %70 = vector.load %arg14[%c0_31, %c0_32, %c0_33] : memref<1x8x128xf32, #tpu.memory_space<vmem>>, vector<1x8x128xf32>
    %71 = vector.shape_cast %70 : vector<1x8x128xf32> to vector<8x128xf32>
    %c0_34 = arith.constant 0 : index
    %c0_35 = arith.constant 0 : index
    %72 = vector.load %arg5[%c0_34, %c0_35] : memref<8x128xbf16, #tpu.memory_space<vmem>>, vector<8x128xbf16>
    %cst_36 = arith.constant dense<0.000000e+00> : vector<8x128xf32>
    %73 = tpu.matmul %72, %69, %cst_36 {dimension_numbers = #tpu.dot_dimension_numbers<[1], [0], [0], [1], [0, 0, 1, 1], [], []>} : vector<8x128xbf16>, vector<128x128xbf16>, vector<8x128xf32> -> vector<8x128xf32>
    %74 = arith.addf %71, %73 : vector<8x128xf32>
    %c0_37 = arith.constant 0 : index
    %c0_38 = arith.constant 0 : index
    %c0_39 = arith.constant 0 : index
    %75 = vector.load %arg14[%c0_37, %c0_38, %c0_39] : memref<1x8x128xf32, #tpu.memory_space<vmem>>, vector<1x8x128xf32>
    %76 = vector.shape_cast %75 : vector<1x8x128xf32> to vector<8x128xf32>
    %77 = vector.shape_cast %74 : vector<8x128xf32> to vector<1x8x128xf32>
    tpu.vector_store %arg14[%c0_37, %c0_38, %c0_39], %77 {strides = array<i32>} : memref<1x8x128xf32, #tpu.memory_space<vmem>>, vector<1x8x128xf32>,
    return
  }
  func.func @transform_0(%arg0: i32, %arg1: i32) -> (i32, i32) {
    %c2_i32 = arith.constant 2 : i32
    %0 = arith.muli %arg0, %c2_i32 : i32
    %1 = arith.addi %0, %arg1 : i32
    %c0_i32 = arith.constant 0 : i32
    %c0_i32_0 = arith.constant 0 : i32
    return %1, %c0_i32 : i32, i32
  }
  func.func @transform_1(%arg0: i32, %arg1: i32) -> (i32, i32) {
    %c2_i32 = arith.constant 2 : i32
    %0 = arith.muli %arg0, %c2_i32 : i32
    %1 = arith.addi %0, %arg1 : i32
    %c0_i32 = arith.constant 0 : i32
    %c0_i32_0 = arith.constant 0 : i32
    return %1, %c0_i32 : i32, i32
  }
  func.func @transform_2(%arg0: i32, %arg1: i32) -> (i32, i32) {
    %c2_i32 = arith.constant 2 : i32
    %0 = arith.muli %arg0, %c2_i32 : i32
    %1 = arith.addi %0, %arg1 : i32
    %c0_i32 = arith.constant 0 : i32
    %c0_i32_0 = arith.constant 0 : i32
    return %1, %c0_i32 : i32, i32
  }
  func.func @transform_3(%arg0: i32, %arg1: i32) -> (i32, i32) {
    %c2_i32 = arith.constant 2 : i32
    %0 = arith.muli %arg0, %c2_i32 : i32
    %1 = arith.addi %0, %arg1 : i32
    %c0_i32 = arith.constant 0 : i32
    %c0_i32_0 = arith.constant 0 : i32
    return %c0_i32, %1 : i32, i32
  }
  func.func @transform_4(%arg0: i32, %arg1: i32) -> (i32, i32) {
    %c0_i32 = arith.constant 0 : i32
    %c0_i32_0 = arith.constant 0 : i32
    %c0_i32_1 = arith.constant 0 : i32
    return %c0_i32, %c0_i32_0 : i32, i32
  }
  func.func @transform_5(%arg0: i32, %arg1: i32) -> (i32, i32) {
    %c0_i32 = arith.constant 0 : i32
    %c0_i32_0 = arith.constant 0 : i32
    %c0_i32_1 = arith.constant 0 : i32
    return %c0_i32, %c0_i32_0 : i32, i32
  }
  func.func @transform_6(%arg0: i32, %arg1: i32) -> (i32, i32) {
    %c0_i32 = arith.constant 0 : i32
    %c0_i32_0 = arith.constant 0 : i32
    %c0_i32_1 = arith.constant 0 : i32
    return %c0_i32, %c0_i32_0 : i32, i32
  }
  func.func @transform_7(%arg0: i32, %arg1: i32) -> (i32, i32) {
    %c0_i32 = arith.constant 0 : i32
    %c0_i32_0 = arith.constant 0 : i32
    %c0_i32_1 = arith.constant 0 : i32
    return %c0_i32, %c0_i32_0 : i32, i32
  }
  func.func @transform_8(%arg0: i32, %arg1: i32) -> (i32, i32) {
    %c0_i32 = arith.constant 0 : i32
    %c0_i32_0 = arith.constant 0 : i32
    %c0_i32_1 = arith.constant 0 : i32
    return %c0_i32, %c0_i32_0 : i32, i32
  }
  func.func @transform_9(%arg0: i32, %arg1: i32) -> (i32, i32) {
    %c0_i32 = arith.constant 0 : i32
    %c0_i32_0 = arith.constant 0 : i32
    %c0_i32_1 = arith.constant 0 : i32
    return %c0_i32, %c0_i32_0 : i32, i32
  }
  func.func @transform_10(%arg0: i32, %arg1: i32) -> (i32, i32) {
    %c0_i32 = arith.constant 0 : i32
    %c0_i32_0 = arith.constant 0 : i32
    %c0_i32_1 = arith.constant 0 : i32
    return %c0_i32, %c0_i32_0 : i32, i32
  }
  func.func @transform_11(%arg0: i32, %arg1: i32) -> (i32, i32) {
    %c0_i32 = arith.constant 0 : i32
    %c0_i32_0 = arith.constant 0 : i32
    %c0_i32_1 = arith.constant 0 : i32
    return %c0_i32, %c0_i32_0 : i32, i32
  }
  func.func @transform_12(%arg0: i32, %arg1: i32) -> (i32, i32, i32) {
    %c0_i32 = arith.constant 0 : i32
    %c0_i32_0 = arith.constant 0 : i32
    %c0_i32_1 = arith.constant 0 : i32
    return %arg0, %c0_i32, %c0_i32_0 : i32, i32, i32
  }
  func.func @transform_13(%arg0: i32, %arg1: i32) -> (i32, i32, i32) {
    %c0_i32 = arith.constant 0 : i32
    %c0_i32_0 = arith.constant 0 : i32
    %c0_i32_1 = arith.constant 0 : i32
    return %arg0, %c0_i32, %c0_i32_0 : i32, i32, i32
  }
}

</mosaic_0001>

<llo_original>
// kernel: tpu_custom_call.1
$region0: #{tpu_custom_call.1}
  #allocation0 [shape = 'u32[]', space=smem, size = 0x4, offset = 0x4, fixed_abs, tag = 'smem constant byte address 0x4 - core index']
  #allocation1 [shape = 'u32[144,128]{1,0:T(1,128)}', space=vmem, size = 0x12000, scoped, tag = 'internal scratch']
  %s0 = inlined_call_operand.vmem [shape: s32[512,1], index: 0, kind: input, shape index: {}]
  %s1 = inlined_call_operand.vmem [shape: s32[512,1], index: 1, kind: input, shape index: {}]
  %s2 = inlined_call_operand.vmem [shape: f32[512,2], index: 2, kind: input, shape index: {}]
  %s3 = inlined_call_operand.vmem [shape: bf16[8,512], index: 3, kind: input, shape index: {}]
  %s4 = inlined_call_operand.vmem [shape: s32[1,128], index: 4, kind: input, shape index: {}]
  %s5 = inlined_call_operand.vmem [shape: bf16[128,128], index: 5, kind: input, shape index: {}]
  %s6 = inlined_call_operand.vmem [shape: bf16[128,128], index: 6, kind: input, shape index: {}]
  %s7 = inlined_call_operand.vmem [shape: f32[2,128], index: 7, kind: input, shape index: {}]
  %s8 = inlined_call_operand.vmem [shape: f32[1,128], index: 8, kind: input, shape index: {}]
  %s9 = inlined_call_operand.vmem [shape: bf16[128,128], index: 9, kind: input, shape index: {}]
  %s10 = inlined_call_operand.vmem [shape: f32[1,128], index: 10, kind: input, shape index: {}]
  %s11 = inlined_call_operand.vmem [shape: f32[1,128], index: 11, kind: input, shape index: {}]
  %s12 = inlined_call_operand.hbm [shape: f32[2,8,128], index: 12, kind: output, shape index: {0}]
  %s13 = inlined_call_operand.hbm [shape: f32[2,1,128], index: 13, kind: output, shape index: {1}]
  %14 = xla_tuple %s12, %s13
  %s15 = sld [smem:[#allocation0]]
  $region93: #{tpu_custom_call.1} parent=0
    _
  %s17 = ssub.s32 1, %s15
  %s18 = scalar_select 0, %s17, %s15
  $region1: #{tpu_custom_call.1} parent=0
    #allocation2 [shape = 'u8[8192]{0}', space=vmem, size = 0x2000, scoped, tag = 'output window, operand 0']
    #allocation3 [shape = 's32[2]{0}', space=sflag, size = 0x8, scoped, tag = 'scoped memory for tpu_custom_call.1']
    #allocation4 [shape = 'u8[1024]{0}', space=vmem, size = 0x400, scoped, tag = 'output window, operand 1']
    #allocation5 [shape = 's32[2]{0}', space=sflag, size = 0x8, scoped, tag = 'scoped memory for tpu_custom_call.1']
    %19 = vsyncpa [#allocation3], 0
    %s20 = scalar_lea.sflag [#allocation3], 1
    %21 = vsyncpa %s20, 0
    %22 = vsyncpa [#allocation5], 0
    %s23 = scalar_lea.sflag [#allocation5], 1
    %24 = vsyncpa %s23, 0
    loop: start=0, step=1, limit=6
    $region2: #{tpu_custom_call.1} parent=1 // loop_pre_header
      _
    $region3: #{tpu_custom_call.1} parent=1 // loop_header
      %s26 = sphi 0, %s30
      %p27 = scmp.ge.s32.totalorder %s26, 6
      %s33 = sphi 0, %s45
      %s34 = sphi 0, %s41
      %s35 = sphi 0, %s33
      %s36 = sphi 0, %s34
      %s37 = sphi 0, %s35
      %s38 = sphi 0, %s36
      %s52 = sphi 0, %s54
      %s55 = sphi 0, %s52
      %s56 = sphi 0, %s55
      %s72 = sphi 0, %s56
      %s82 = sphi 0, %s84
      %s85 = sphi 0, %s82
      %s86 = sphi 0, %s85
      %s102 = sphi 0, %s86
      %s112 = sphi 0, %s114
      %s115 = sphi 0, %s112
      %s116 = sphi 0, %s115
      %s132 = sphi 0, %s116
      %s142 = sphi 0, %s144
      %s145 = sphi 0, %s142
      %s146 = sphi 0, %s145
      %s162 = sphi 0, %s146
      %s166 = sphi 0, %s166
      %s168 = sphi 0, %s166
      %s169 = sphi 0, %s168
      %s183 = sphi 0, %s169
      %s187 = sphi 0, %s187
      %s189 = sphi 0, %s187
      %s190 = sphi 0, %s189
      %s204 = sphi 0, %s190
      %s208 = sphi 0, %s208
      %s210 = sphi 0, %s208
      %s211 = sphi 0, %s210
      %s225 = sphi 0, %s211
      %s229 = sphi 0, %s229
      %s231 = sphi 0, %s229
      %s232 = sphi 0, %s231
      %s246 = sphi 0, %s232
      %s250 = sphi 0, %s250
      %s252 = sphi 0, %s250
      %s253 = sphi 0, %s252
      %s267 = sphi 0, %s253
      %s271 = sphi 0, %s271
      %s273 = sphi 0, %s271
      %s274 = sphi 0, %s273
      %s288 = sphi 0, %s274
      %s292 = sphi 0, %s292
      %s294 = sphi 0, %s292
      %s295 = sphi 0, %s294
      %s309 = sphi 0, %s295
      %s313 = sphi 0, %s313
      %s315 = sphi 0, %s313
      %s316 = sphi 0, %s315
      %s330 = sphi 0, %s316
      %s336 = sphi 0, %s338
      %s339 = sphi 0, %s336
      %s340 = sphi 0, %s339
      %s356 = sphi 0, %s340
      %s362 = sphi 0, %s364
      %s365 = sphi 0, %s362
      %s366 = sphi 0, %s365
      %s382 = sphi 0, %s366
    $region4: #{tpu_custom_call.1} parent=1 // loop_header_branch
      %29 = sbr.rel (%p27) target = $region8
    $region5: #{tpu_custom_call.1} parent=1 // loop_body
      %s31 = ssub.s32 %s26, 1
      %s32 = ssub.s32 %s26, 2
      %s39 = sadd.s32 1, %s34
      %p40 = scmp.ge.s32.totalorder %s39, 2
      %s41 = scalar_select %p40, 0, %s39
      %s42 = sadd.s32 1, %s33
      %s43 = scalar_select %p40, %s42, %s33
      %p44 = scmp.ge.s32.totalorder %s43, 2
      %s45 = scalar_select %p44, 0, %s43
      %s46 = smul.u32 %s33, 2
      %s47 = sadd.s32 %s46, %s34
      %s48 = smul.u32 %s45, 2
      %s49 = sadd.s32 %s48, %s41
      %s50 = ssub.s32 %s47, %s49
      %p51 = scmp.eq.s32.totalorder %s50, 0
      %s53 = sadd.s32 %s52, 1
      %s54 = scalar_select %p51, %s52, %s53
      %p57 = pneg %p51
      %p58 = scmp.eq.s32.totalorder %s26, 3
      %p59 = por %p57, %p58
      %p60 = scmp.ne.s32.totalorder %s52, %s55
      %p61 = scmp.eq.s32.totalorder %s26, 0
      %p62 = por %p60, %p61
      %p63 = scmp.ne.s32.totalorder %s52, %s55
      %p64 = scmp.eq.s32.totalorder %s31, 3
      %p65 = por %p63, %p64
      %p66 = scmp.ne.s32.totalorder %s55, %s56
      %p67 = scmp.eq.s32.totalorder %s31, 0
      %p68 = por %p66, %p67
      %p69 = scmp.ne.s32.totalorder %s55, %s56
      %p70 = scmp.eq.s32.totalorder %s32, 3
      %p71 = por %p69, %p70
      %p73 = scmp.ne.s32.totalorder %s56, %s72
      %p74 = scmp.eq.s32.totalorder %s32, 0
      %p75 = por %p73, %p74
      %s76 = smul.u32 %s33, 2
      %s77 = sadd.s32 %s76, %s34
      %s78 = smul.u32 %s45, 2
      %s79 = sadd.s32 %s78, %s41
      %s80 = ssub.s32 %s77, %s79
      %p81 = scmp.eq.s32.totalorder %s80, 0
      %s83 = sadd.s32 %s82, 1
      %s84 = scalar_select %p81, %s82, %s83
      %p87 = pneg %p81
      %p88 = scmp.eq.s32.totalorder %s26, 3
      %p89 = por %p87, %p88
      %p90 = scmp.ne.s32.totalorder %s82, %s85
      %p91 = scmp.eq.s32.totalorder %s26, 0
      %p92 = por %p90, %p91
      %p93 = scmp.ne.s32.totalorder %s82, %s85
      %p94 = scmp.eq.s32.totalorder %s31, 3
      %p95 = por %p93, %p94
      %p96 = scmp.ne.s32.totalorder %s85, %s86
      %p97 = scmp.eq.s32.totalorder %s31, 0
      %p98 = por %p96, %p97
      %p99 = scmp.ne.s32.totalorder %s85, %s86
      %p100 = scmp.eq.s32.totalorder %s32, 3
      %p101 = por %p99, %p100
      %p103 = scmp.ne.s32.totalorder %s86, %s102
      %p104 = scmp.eq.s32.totalorder %s32, 0
      %p105 = por %p103, %p104
      %s106 = smul.u32 %s33, 2
      %s107 = sadd.s32 %s106, %s34
      %s108 = smul.u32 %s45, 2
      %s109 = sadd.s32 %s108, %s41
      %s110 = ssub.s32 %s107, %s109
      %p111 = scmp.eq.s32.totalorder %s110, 0
      %s113 = sadd.s32 %s112, 1
      %s114 = scalar_select %p111, %s112, %s113
      %p117 = pneg %p111
      %p118 = scmp.eq.s32.totalorder %s26, 3
      %p119 = por %p117, %p118
      %p120 = scmp.ne.s32.totalorder %s112, %s115
      %p121 = scmp.eq.s32.totalorder %s26, 0
      %p122 = por %p120, %p121
      %p123 = scmp.ne.s32.totalorder %s112, %s115
      %p124 = scmp.eq.s32.totalorder %s31, 3
      %p125 = por %p123, %p124
      %p126 = scmp.ne.s32.totalorder %s115, %s116
      %p127 = scmp.eq.s32.totalorder %s31, 0
      %p128 = por %p126, %p127
      %p129 = scmp.ne.s32.totalorder %s115, %s116
      %p130 = scmp.eq.s32.totalorder %s32, 3
      %p131 = por %p129, %p130
      %p133 = scmp.ne.s32.totalorder %s116, %s132
      %p134 = scmp.eq.s32.totalorder %s32, 0
      %p135 = por %p133, %p134
      %s136 = smul.u32 %s33, 2
      %s137 = sadd.s32 %s136, %s34
      %s138 = smul.u32 %s45, 2
      %s139 = sadd.s32 %s138, %s41
      %s140 = ssub.s32 %s137, %s139
      %p141 = scmp.eq.s32.totalorder %s140, 0
      %s143 = sadd.s32 %s142, 1
      %s144 = scalar_select %p141, %s142, %s143
      %p147 = pneg %p141
      %p148 = scmp.eq.s32.totalorder %s26, 3
      %p149 = por %p147, %p148
      %p150 = scmp.ne.s32.totalorder %s142, %s145
      %p151 = scmp.eq.s32.totalorder %s26, 0
      %p152 = por %p150, %p151
      %p153 = scmp.ne.s32.totalorder %s142, %s145
      %p154 = scmp.eq.s32.totalorder %s31, 3
      %p155 = por %p153, %p154
      %p156 = scmp.ne.s32.totalorder %s145, %s146
      %p157 = scmp.eq.s32.totalorder %s31, 0
      %p158 = por %p156, %p157
      %p159 = scmp.ne.s32.totalorder %s145, %s146
      %p160 = scmp.eq.s32.totalorder %s32, 3
      %p161 = por %p159, %p160
      %p163 = scmp.ne.s32.totalorder %s146, %s162
      %p164 = scmp.eq.s32.totalorder %s32, 0
      %p165 = por %p163, %p164
      %s167 = sadd.s32 %s166, 1
      %p170 = scmp.eq.s32.totalorder %s26, 3
      %p171 = scmp.ne.s32.totalorder %s166, %s168
      %p172 = scmp.eq.s32.totalorder %s26, 0
      %p173 = por %p171, %p172
      %p174 = scmp.ne.s32.totalorder %s166, %s168
      %p175 = scmp.eq.s32.totalorder %s31, 3
      %p176 = por %p174, %p175
      %p177 = scmp.ne.s32.totalorder %s168, %s169
      %p178 = scmp.eq.s32.totalorder %s31, 0
      %p179 = por %p177, %p178
      %p180 = scmp.ne.s32.totalorder %s168, %s169
      %p181 = scmp.eq.s32.totalorder %s32, 3
      %p182 = por %p180, %p181
      %p184 = scmp.ne.s32.totalorder %s169, %s183
      %p185 = scmp.eq.s32.totalorder %s32, 0
      %p186 = por %p184, %p185
      %s188 = sadd.s32 %s187, 1
      %p191 = scmp.eq.s32.totalorder %s26, 3
      %p192 = scmp.ne.s32.totalorder %s187, %s189
      %p193 = scmp.eq.s32.totalorder %s26, 0
      %p194 = por %p192, %p193
      %p195 = scmp.ne.s32.totalorder %s187, %s189
      %p196 = scmp.eq.s32.totalorder %s31, 3
      %p197 = por %p195, %p196
      %p198 = scmp.ne.s32.totalorder %s189, %s190
      %p199 = scmp.eq.s32.totalorder %s31, 0
      %p200 = por %p198, %p199
      %p201 = scmp.ne.s32.totalorder %s189, %s190
      %p202 = scmp.eq.s32.totalorder %s32, 3
      %p203 = por %p201, %p202
      %p205 = scmp.ne.s32.totalorder %s190, %s204
      %p206 = scmp.eq.s32.totalorder %s32, 0
      %p207 = por %p205, %p206
      %s209 = sadd.s32 %s208, 1
      %p212 = scmp.eq.s32.totalorder %s26, 3
      %p213 = scmp.ne.s32.totalorder %s208, %s210
      %p214 = scmp.eq.s32.totalorder %s26, 0
      %p215 = por %p213, %p214
      %p216 = scmp.ne.s32.totalorder %s208, %s210
      %p217 = scmp.eq.s32.totalorder %s31, 3
      %p218 = por %p216, %p217
      %p219 = scmp.ne.s32.totalorder %s210, %s211
      %p220 = scmp.eq.s32.totalorder %s31, 0
      %p221 = por %p219, %p220
      %p222 = scmp.ne.s32.totalorder %s210, %s211
      %p223 = scmp.eq.s32.totalorder %s32, 3
      %p224 = por %p222, %p223
      %p226 = scmp.ne.s32.totalorder %s211, %s225
      %p227 = scmp.eq.s32.totalorder %s32, 0
      %p228 = por %p226, %p227
      %s230 = sadd.s32 %s229, 1
      %p233 = scmp.eq.s32.totalorder %s26, 3
      %p234 = scmp.ne.s32.totalorder %s229, %s231
      %p235 = scmp.eq.s32.totalorder %s26, 0
      %p236 = por %p234, %p235
      %p237 = scmp.ne.s32.totalorder %s229, %s231
      %p238 = scmp.eq.s32.totalorder %s31, 3
      %p239 = por %p237, %p238
      %p240 = scmp.ne.s32.totalorder %s231, %s232
      %p241 = scmp.eq.s32.totalorder %s31, 0
      %p242 = por %p240, %p241
      %p243 = scmp.ne.s32.totalorder %s231, %s232
      %p244 = scmp.eq.s32.totalorder %s32, 3
      %p245 = por %p243, %p244
      %p247 = scmp.ne.s32.totalorder %s232, %s246
      %p248 = scmp.eq.s32.totalorder %s32, 0
      %p249 = por %p247, %p248
      %s251 = sadd.s32 %s250, 1
      %p254 = scmp.eq.s32.totalorder %s26, 3
      %p255 = scmp.ne.s32.totalorder %s250, %s252
      %p256 = scmp.eq.s32.totalorder %s26, 0
      %p257 = por %p255, %p256
      %p258 = scmp.ne.s32.totalorder %s250, %s252
      %p259 = scmp.eq.s32.totalorder %s31, 3
      %p260 = por %p258, %p259
      %p261 = scmp.ne.s32.totalorder %s252, %s253
      %p262 = scmp.eq.s32.totalorder %s31, 0
      %p263 = por %p261, %p262
      %p264 = scmp.ne.s32.totalorder %s252, %s253
      %p265 = scmp.eq.s32.totalorder %s32, 3
      %p266 = por %p264, %p265
      %p268 = scmp.ne.s32.totalorder %s253, %s267
      %p269 = scmp.eq.s32.totalorder %s32, 0
      %p270 = por %p268, %p269
      %s272 = sadd.s32 %s271, 1
      %p275 = scmp.eq.s32.totalorder %s26, 3
      %p276 = scmp.ne.s32.totalorder %s271, %s273
      %p277 = scmp.eq.s32.totalorder %s26, 0
      %p278 = por %p276, %p277
      %p279 = scmp.ne.s32.totalorder %s271, %s273
      %p280 = scmp.eq.s32.totalorder %s31, 3
      %p281 = por %p279, %p280
      %p282 = scmp.ne.s32.totalorder %s273, %s274
      %p283 = scmp.eq.s32.totalorder %s31, 0
      %p284 = por %p282, %p283
      %p285 = scmp.ne.s32.totalorder %s273, %s274
      %p286 = scmp.eq.s32.totalorder %s32, 3
      %p287 = por %p285, %p286
      %p289 = scmp.ne.s32.totalorder %s274, %s288
      %p290 = scmp.eq.s32.totalorder %s32, 0
      %p291 = por %p289, %p290
      %s293 = sadd.s32 %s292, 1
      %p296 = scmp.eq.s32.totalorder %s26, 3
      %p297 = scmp.ne.s32.totalorder %s292, %s294
      %p298 = scmp.eq.s32.totalorder %s26, 0
      %p299 = por %p297, %p298
      %p300 = scmp.ne.s32.totalorder %s292, %s294
      %p301 = scmp.eq.s32.totalorder %s31, 3
      %p302 = por %p300, %p301
      %p303 = scmp.ne.s32.totalorder %s294, %s295
      %p304 = scmp.eq.s32.totalorder %s31, 0
      %p305 = por %p303, %p304
      %p306 = scmp.ne.s32.totalorder %s294, %s295
      %p307 = scmp.eq.s32.totalorder %s32, 3
      %p308 = por %p306, %p307
      %p310 = scmp.ne.s32.totalorder %s295, %s309
      %p311 = scmp.eq.s32.totalorder %s32, 0
      %p312 = por %p310, %p311
      %s314 = sadd.s32 %s313, 1
      %p317 = scmp.eq.s32.totalorder %s26, 3
      %p318 = scmp.ne.s32.totalorder %s313, %s315
      %p319 = scmp.eq.s32.totalorder %s26, 0
      %p320 = por %p318, %p319
      %p321 = scmp.ne.s32.totalorder %s313, %s315
      %p322 = scmp.eq.s32.totalorder %s31, 3
      %p323 = por %p321, %p322
      %p324 = scmp.ne.s32.totalorder %s315, %s316
      %p325 = scmp.eq.s32.totalorder %s31, 0
      %p326 = por %p324, %p325
      %p327 = scmp.ne.s32.totalorder %s315, %s316
      %p328 = scmp.eq.s32.totalorder %s32, 3
      %p329 = por %p327, %p328
      %p331 = scmp.ne.s32.totalorder %s316, %s330
      %p332 = scmp.eq.s32.totalorder %s32, 0
      %p333 = por %p331, %p332
      %s334 = ssub.s32 %s33, %s45
      %p335 = scmp.eq.s32.totalorder %s334, 0
      %s337 = sadd.s32 %s336, 1
      %s338 = scalar_select %p335, %s336, %s337
      %p341 = pneg %p335
      %p342 = scmp.eq.s32.totalorder %s26, 3
      %p343 = por %p341, %p342
      %p344 = scmp.ne.s32.totalorder %s336, %s339
      %p345 = scmp.eq.s32.totalorder %s26, 0
      %p346 = por %p344, %p345
      %p347 = scmp.ne.s32.totalorder %s336, %s339
      %p348 = scmp.eq.s32.totalorder %s31, 3
      %p349 = por %p347, %p348
      %p350 = scmp.ne.s32.totalorder %s339, %s340
      %p351 = scmp.eq.s32.totalorder %s31, 0
      %p352 = por %p350, %p351
      %p353 = scmp.ne.s32.totalorder %s339, %s340
      %p354 = scmp.eq.s32.totalorder %s32, 3
      %p355 = por %p353, %p354
      %p357 = scmp.ne.s32.totalorder %s340, %s356
      %p358 = scmp.eq.s32.totalorder %s32, 0
      %p359 = por %p357, %p358
      %s360 = ssub.s32 %s33, %s45
      %p361 = scmp.eq.s32.totalorder %s360, 0
      %s363 = sadd.s32 %s362, 1
      %s364 = scalar_select %p361, %s362, %s363
      %p367 = pneg %p361
      %p368 = scmp.eq.s32.totalorder %s26, 3
      %p369 = por %p367, %p368
      %p370 = scmp.ne.s32.totalorder %s362, %s365
      %p371 = scmp.eq.s32.totalorder %s26, 0
      %p372 = por %p370, %p371
      %p373 = scmp.ne.s32.totalorder %s362, %s365
      %p374 = scmp.eq.s32.totalorder %s31, 3
      %p375 = por %p373, %p374
      %p376 = scmp.ne.s32.totalorder %s365, %s366
      %p377 = scmp.eq.s32.totalorder %s31, 0
      %p378 = por %p376, %p377
      %p379 = scmp.ne.s32.totalorder %s365, %s366
      %p380 = scmp.eq.s32.totalorder %s32, 3
      %p381 = por %p379, %p380
      %p383 = scmp.ne.s32.totalorder %s366, %s382
      %p384 = scmp.eq.s32.totalorder %s32, 0
      %p385 = por %p383, %p384
      %p386 = scmp.le.s32.totalorder 1, %s26
      %p387 = scmp.lt.s32.totalorder %s26, 5
      %p388 = pnand %p386, %p387
      %p389 = pneg %p388
      // Predicated region
      $region9: #{tpu_custom_call.1} parent=5 // pred_check
        _
      $region10: #{tpu_custom_call.1} parent=5 // pred_check_branch
        %391 = sbr.rel (%p388) target = $region12
      $region11: #{tpu_custom_call.1} parent=5 // pred_region
        %s392 = ssub.s32 %s26, 1
        // Predicated region
        $region13: #{tpu_custom_call.1} parent=11 // pred_check
          %p393 = pneg %p179
        $region14: #{tpu_custom_call.1} parent=11 // pred_check_branch
          %395 = sbr.rel (%p393) target = $region16
        $region15: #{tpu_custom_call.1} parent=11 // pred_region
          _
        $region16: #{tpu_custom_call.1} parent=11 // pred_fallthru
          _
        // Predicated region
        $region17: #{tpu_custom_call.1} parent=11 // pred_check
          %p396 = pneg %p200
        $region18: #{tpu_custom_call.1} parent=11 // pred_check_branch
          %398 = sbr.rel (%p396) target = $region20
        $region19: #{tpu_custom_call.1} parent=11 // pred_region
          _
        $region20: #{tpu_custom_call.1} parent=11 // pred_fallthru
          _
        // Predicated region
        $region21: #{tpu_custom_call.1} parent=11 // pred_check
          %p399 = pneg %p221
        $region22: #{tpu_custom_call.1} parent=11 // pred_check_branch
          %401 = sbr.rel (%p399) target = $region24
        $region23: #{tpu_custom_call.1} parent=11 // pred_region
          _
        $region24: #{tpu_custom_call.1} parent=11 // pred_fallthru
          _
        // Predicated region
        $region25: #{tpu_custom_call.1} parent=11 // pred_check
          %p402 = pneg %p242
        $region26: #{tpu_custom_call.1} parent=11 // pred_check_branch
          %404 = sbr.rel (%p402) target = $region28
        $region27: #{tpu_custom_call.1} parent=11 // pred_region
          _
        $region28: #{tpu_custom_call.1} parent=11 // pred_fallthru
          _
        // Predicated region
        $region29: #{tpu_custom_call.1} parent=11 // pred_check
          %p405 = pneg %p263
        $region30: #{tpu_custom_call.1} parent=11 // pred_check_branch
          %407 = sbr.rel (%p405) target = $region32
        $region31: #{tpu_custom_call.1} parent=11 // pred_region
          _
        $region32: #{tpu_custom_call.1} parent=11 // pred_fallthru
          _
        // Predicated region
        $region33: #{tpu_custom_call.1} parent=11 // pred_check
          %p408 = pneg %p284
        $region34: #{tpu_custom_call.1} parent=11 // pred_check_branch
          %410 = sbr.rel (%p408) target = $region36
        $region35: #{tpu_custom_call.1} parent=11 // pred_region
          _
        $region36: #{tpu_custom_call.1} parent=11 // pred_fallthru
          _
        // Predicated region
        $region37: #{tpu_custom_call.1} parent=11 // pred_check
          %p411 = pneg %p305
        $region38: #{tpu_custom_call.1} parent=11 // pred_check_branch
          %413 = sbr.rel (%p411) target = $region40
        $region39: #{tpu_custom_call.1} parent=11 // pred_region
          _
        $region40: #{tpu_custom_call.1} parent=11 // pred_fallthru
          _
        // Predicated region
        $region41: #{tpu_custom_call.1} parent=11 // pred_check
          %p414 = pneg %p326
        $region42: #{tpu_custom_call.1} parent=11 // pred_check_branch
          %416 = sbr.rel (%p414) target = $region44
        $region43: #{tpu_custom_call.1} parent=11 // pred_region
          _
        $region44: #{tpu_custom_call.1} parent=11 // pred_fallthru
          _
      $region12: #{tpu_custom_call.1} parent=5 // pred_fallthru
        _
      %p417 = scmp.lt.s32.totalorder %s26, 4
      // Predicated region
      $region45: #{tpu_custom_call.1} parent=5 // pred_check
        %p418 = pneg %p417
      $region46: #{tpu_custom_call.1} parent=5 // pred_check_branch
        %420 = sbr.rel (%p418) target = $region48
      $region47: #{tpu_custom_call.1} parent=5 // pred_region
        // Predicated region
        $region49: #{tpu_custom_call.1} parent=47 // pred_check
          %p421 = pneg %p62
        $region50: #{tpu_custom_call.1} parent=47 // pred_check_branch
          %423 = sbr.rel (%p421) target = $region52
        $region51: #{tpu_custom_call.1} parent=47 // pred_region
          %s424 = smul.u32 %s33, 2
          %s425 = sadd.s32 %s424, %s34
          %s426 = smul.u32 16, %s425
          %p427 = scmp.lt.s32.totalorder %s426, 63
          %s428 = scalar_select %p427, %s426, 63
          %s429 = smul.addr %s428, 8
          %s430 = scalar_lea.vmem %s0, %s429
          %s431 = smul.u32 %s33, 2
          %s432 = sadd.s32 %s431, %s34
          %s433 = smul.u32 16, %s432
        $region52: #{tpu_custom_call.1} parent=47 // pred_fallthru
          _
        // Predicated region
        $region53: #{tpu_custom_call.1} parent=47 // pred_check
          %p434 = pneg %p92
        $region54: #{tpu_custom_call.1} parent=47 // pred_check_branch
          %436 = sbr.rel (%p434) target = $region56
        $region55: #{tpu_custom_call.1} parent=47 // pred_region
          %s437 = smul.u32 %s33, 2
          %s438 = sadd.s32 %s437, %s34
          %s439 = smul.u32 16, %s438
          %p440 = scmp.lt.s32.totalorder %s439, 63
          %s441 = scalar_select %p440, %s439, 63
          %s442 = smul.addr %s441, 8
          %s443 = scalar_lea.vmem %s1, %s442
          %s444 = smul.u32 %s33, 2
          %s445 = sadd.s32 %s444, %s34
          %s446 = smul.u32 16, %s445
        $region56: #{tpu_custom_call.1} parent=47 // pred_fallthru
          _
        // Predicated region
        $region57: #{tpu_custom_call.1} parent=47 // pred_check
          %p447 = pneg %p122
        $region58: #{tpu_custom_call.1} parent=47 // pred_check_branch
          %449 = sbr.rel (%p447) target = $region60
        $region59: #{tpu_custom_call.1} parent=47 // pred_region
          %s450 = smul.u32 %s33, 2
          %s451 = sadd.s32 %s450, %s34
          %s452 = smul.u32 16, %s451
          %p453 = scmp.lt.s32.totalorder %s452, 63
          %s454 = scalar_select %p453, %s452, 63
          %s455 = smul.addr %s454, 8
          %s456 = scalar_lea.vmem %s2, %s455
          %s457 = smul.u32 %s33, 2
          %s458 = sadd.s32 %s457, %s34
          %s459 = smul.u32 16, %s458
        $region60: #{tpu_custom_call.1} parent=47 // pred_fallthru
          _
        // Predicated region
        $region61: #{tpu_custom_call.1} parent=47 // pred_check
          %p460 = pneg %p152
        $region62: #{tpu_custom_call.1} parent=47 // pred_check_branch
          %462 = sbr.rel (%p460) target = $region64
        $region63: #{tpu_custom_call.1} parent=47 // pred_region
          %s463 = smul.u32 %s33, 2
          %s464 = sadd.s32 %s463, %s34
          %p465 = scmp.lt.s32.totalorder %s464, 3
          %s466 = scalar_select %p465, %s464, 3
          %s467 = smul.addr %s466, 4
          %s468 = scalar_lea.vmem %s3, %s467
          %s469 = smul.u32 %s33, 2
          %s470 = sadd.s32 %s469, %s34
        $region64: #{tpu_custom_call.1} parent=47 // pred_fallthru
          _
      $region48: #{tpu_custom_call.1} parent=5 // pred_fallthru
        _
      %p471 = scmp.le.s32.totalorder 1, %s26
      %p472 = scmp.lt.s32.totalorder %s26, 5
      %p473 = pnand %p471, %p472
      %p474 = pneg %p473
      // Predicated region
      $region65: #{tpu_custom_call.1} parent=5 // pred_check
        _
      $region66: #{tpu_custom_call.1} parent=5 // pred_check_branch
        %476 = sbr.rel (%p473) target = $region68
      $region67: #{tpu_custom_call.1} parent=5 // pred_region
        %s477 = ssub.s32 %s26, 1
        %s478 = smul.u32 %s35, 2
        %s479 = sadd.s32 %s478, %s36
        %s480 = smul.u32 16, %s479
        %p481 = scmp.lt.s32.totalorder %s480, 63
        %s482 = scalar_select %p481, %s480, 63
        %s483 = smul.addr %s482, 8
        %s484 = scalar_lea.vmem %s0, %s483
        %p485 = pneg %p68
        %p486 = pneg %p65
        %s487 = smul.u32 %s35, 2
        %s488 = sadd.s32 %s487, %s36
        %s489 = smul.u32 16, %s488
        %p490 = scmp.lt.s32.totalorder %s489, 63
        %s491 = scalar_select %p490, %s489, 63
        %s492 = smul.addr %s491, 8
        %s493 = scalar_lea.vmem %s1, %s492
        %p494 = pneg %p98
        %p495 = pneg %p95
        %s496 = smul.u32 %s35, 2
        %s497 = sadd.s32 %s496, %s36
        %s498 = smul.u32 16, %s497
        %p499 = scmp.lt.s32.totalorder %s498, 63
        %s500 = scalar_select %p499, %s498, 63
        %s501 = smul.addr %s500, 8
        %s502 = scalar_lea.vmem %s2, %s501
        %p503 = pneg %p128
        %p504 = pneg %p125
        %s505 = smul.u32 %s35, 2
        %s506 = sadd.s32 %s505, %s36
        %p507 = scmp.lt.s32.totalorder %s506, 3
        %s508 = scalar_select %p507, %s506, 3
        %s509 = smul.addr %s508, 4
        %s510 = scalar_lea.vmem %s3, %s509
        %p511 = pneg %p158
        %p512 = pneg %p155
        %p513 = pneg %p179
        %p514 = pneg %p176
        %p515 = pneg %p200
        %p516 = pneg %p197
        %p517 = pneg %p221
        %p518 = pneg %p218
        %p519 = pneg %p242
        %p520 = pneg %p239
        %p521 = pneg %p263
        %p522 = pneg %p260
        %p523 = pneg %p284
        %p524 = pneg %p281
        %p525 = pneg %p305
        %p526 = pneg %p302
        %p527 = pneg %p326
        %p528 = pneg %p323
        %p529 = pneg %p352
        %p530 = pneg %p349
        %s531 = sand.u32 %s339, 1
        %s532 = scalar_lea.sflag [#allocation3], %s531
        %s533 = sand.u32 %s339, 1
        %s534 = smul.addr %s533, 8
        %s535 = scalar_lea.vmem [#allocation2], %s534
        %p536 = pneg %p378
        %p537 = pneg %p375
        %s538 = sand.u32 %s365, 1
        %s539 = scalar_lea.sflag [#allocation5], %s538
        %s540 = sand.u32 %s365, 1
        %s541 = scalar_lea.vmem [#allocation4], %s540
        %s542 = smul.u32 %s35, 2
        %s543 = sadd.s32 %s542, %s36
        %s544 = smul.u32 16, %s543
        %p545 = scmp.lt.s32.totalorder %s544, 63
        %s546 = scalar_select %p545, %s544, 63
        %s547 = smul.addr %s546, 8
        %s548 = scalar_lea.vmem %s0, %s547
        %s549 = smul.u32 %s35, 2
        %s550 = sadd.s32 %s549, %s36
        %s551 = smul.u32 16, %s550
        %s552 = smul.u32 %s35, 2
        %s553 = sadd.s32 %s552, %s36
        %s554 = smul.u32 16, %s553
        %p555 = scmp.lt.s32.totalorder %s554, 63
        %s556 = scalar_select %p555, %s554, 63
        %s557 = smul.addr %s556, 8
        %s558 = scalar_lea.vmem %s1, %s557
        %s559 = smul.u32 %s35, 2
        %s560 = sadd.s32 %s559, %s36
        %s561 = smul.u32 16, %s560
        %s562 = smul.u32 %s35, 2
        %s563 = sadd.s32 %s562, %s36
        %s564 = smul.u32 16, %s563
        %p565 = scmp.lt.s32.totalorder %s564, 63
        %s566 = scalar_select %p565, %s564, 63
        %s567 = smul.addr %s566, 8
        %s568 = scalar_lea.vmem %s2, %s567
        %s569 = smul.u32 %s35, 2
        %s570 = sadd.s32 %s569, %s36
        %s571 = smul.u32 16, %s570
        %s572 = smul.u32 %s35, 2
        %s573 = sadd.s32 %s572, %s36
        %p574 = scmp.lt.s32.totalorder %s573, 3
        %s575 = scalar_select %p574, %s573, 3
        %s576 = smul.addr %s575, 4
        %s577 = scalar_lea.vmem %s3, %s576
        %s578 = smul.u32 %s35, 2
        %s579 = sadd.s32 %s578, %s36
        %p581 = scmp.eq.s32.totalorder %s36, 0
        // Predicated region
        $region69: #{tpu_custom_call.1} parent=67 // pred_check
          %p582 = pneg %p581
        $region70: #{tpu_custom_call.1} parent=67 // pred_check_branch
          %584 = sbr.rel (%p582) target = $region72
        $region71: #{tpu_custom_call.1} parent=67 // pred_region
          %585 = vst [vmem:[%s535] sm:$0xff] 0.0
          %586 = vst [vmem:[%s541] sm:$0x1] 0.0
        $region72: #{tpu_custom_call.1} parent=67 // pred_fallthru
          _
        %v587 = vld [vmem:[%s4] sm:$0x1]
        %v588 = vld [vmem:[%s548] sm:$0xff]
        %v589 = vld [vmem:[%s548 + $0x8] sm:$0xff]
        %v590 = vld [vmem:[%s548 + $0x10] sm:$0xff]
        %v591 = vld [vmem:[%s548 + $0x18] sm:$0xff]
        %v592 = vld [vmem:[%s548 + $0x20] sm:$0xff]
        %v593 = vld [vmem:[%s548 + $0x28] sm:$0xff]
        %v594 = vld [vmem:[%s548 + $0x30] sm:$0xff]
        %v595 = vld [vmem:[%s548 + $0x38] sm:$0xff]
        %v596 = vld [vmem:[%s548 + $0x40] sm:$0xff]
        %v597 = vld [vmem:[%s548 + $0x48] sm:$0xff]
        %v598 = vld [vmem:[%s548 + $0x50] sm:$0xff]
        %v599 = vld [vmem:[%s548 + $0x58] sm:$0xff]
        %v600 = vld [vmem:[%s548 + $0x60] sm:$0xff]
        %v601 = vld [vmem:[%s548 + $0x68] sm:$0xff]
        %v602 = vld [vmem:[%s548 + $0x70] sm:$0xff]
        %v603 = vld [vmem:[%s548 + $0x78] sm:$0xff]
        %v604 = vlaneseq
        %v605 = vshrl.u32 %v604, 7
        %v606 = vsub.s32 0, %v605
        %v607 = vrot.slane %v587, %v606
        %608 = vset.pattern.permute.xlu0 0
        %609 = vperm.xlu0 %608, %v588
        %v610 = vpop.permute.xlu0 %609
        %611 = vset.pattern.permute.xlu0 0
        %612 = vperm.xlu0 %611, %v589
        %v613 = vpop.permute.xlu0 %612
        %614 = vset.pattern.permute.xlu0 0
        %615 = vperm.xlu0 %614, %v590
        %v616 = vpop.permute.xlu0 %615
        %617 = vset.pattern.permute.xlu0 0
        %618 = vperm.xlu0 %617, %v591
        %v619 = vpop.permute.xlu0 %618
        %620 = vset.pattern.permute.xlu0 0
        %621 = vperm.xlu0 %620, %v592
        %v622 = vpop.permute.xlu0 %621
        %623 = vset.pattern.permute.xlu0 0
        %624 = vperm.xlu0 %623, %v593
        %v625 = vpop.permute.xlu0 %624
        %626 = vset.pattern.permute.xlu0 0
        %627 = vperm.xlu0 %626, %v594
        %v628 = vpop.permute.xlu0 %627
        %629 = vset.pattern.permute.xlu0 0
        %630 = vperm.xlu0 %629, %v595
        %v631 = vpop.permute.xlu0 %630
        %632 = vset.pattern.permute.xlu0 0
        %633 = vperm.xlu0 %632, %v596
        %v634 = vpop.permute.xlu0 %633
        %635 = vset.pattern.permute.xlu0 0
        %636 = vperm.xlu0 %635, %v597
        %v637 = vpop.permute.xlu0 %636
        %638 = vset.pattern.permute.xlu0 0
        %639 = vperm.xlu0 %638, %v598
        %v640 = vpop.permute.xlu0 %639
        %641 = vset.pattern.permute.xlu0 0
        %642 = vperm.xlu0 %641, %v599
        %v643 = vpop.permute.xlu0 %642
        %644 = vset.pattern.permute.xlu0 0
        %645 = vperm.xlu0 %644, %v600
        %v646 = vpop.permute.xlu0 %645
        %647 = vset.pattern.permute.xlu0 0
        %648 = vperm.xlu0 %647, %v601
        %v649 = vpop.permute.xlu0 %648
        %650 = vset.pattern.permute.xlu0 0
        %651 = vperm.xlu0 %650, %v602
        %v652 = vpop.permute.xlu0 %651
        %653 = vset.pattern.permute.xlu0 0
        %654 = vperm.xlu0 %653, %v603
        %v655 = vpop.permute.xlu0 %654
        %vm656 = vcmp.eq.s32.totalorder %v607, %v610
        %vm657 = vcmp.eq.s32.totalorder %v607, %v613
        %vm658 = vcmp.eq.s32.totalorder %v607, %v616
        %vm659 = vcmp.eq.s32.totalorder %v607, %v619
        %vm660 = vcmp.eq.s32.totalorder %v607, %v622
        %vm661 = vcmp.eq.s32.totalorder %v607, %v625
        %vm662 = vcmp.eq.s32.totalorder %v607, %v628
        %vm663 = vcmp.eq.s32.totalorder %v607, %v631
        %vm664 = vcmp.eq.s32.totalorder %v607, %v634
        %vm665 = vcmp.eq.s32.totalorder %v607, %v637
        %vm666 = vcmp.eq.s32.totalorder %v607, %v640
        %vm667 = vcmp.eq.s32.totalorder %v607, %v643
        %vm668 = vcmp.eq.s32.totalorder %v607, %v646
        %vm669 = vcmp.eq.s32.totalorder %v607, %v649
        %vm670 = vcmp.eq.s32.totalorder %v607, %v652
        %vm671 = vcmp.eq.s32.totalorder %v607, %v655
        %v672 = vld [vmem:[%s558] sm:$0xff]
        %v673 = vld [vmem:[%s558 + $0x8] sm:$0xff]
        %v674 = vld [vmem:[%s558 + $0x10] sm:$0xff]
        %v675 = vld [vmem:[%s558 + $0x18] sm:$0xff]
        %v676 = vld [vmem:[%s558 + $0x20] sm:$0xff]
        %v677 = vld [vmem:[%s558 + $0x28] sm:$0xff]
        %v678 = vld [vmem:[%s558 + $0x30] sm:$0xff]
        %v679 = vld [vmem:[%s558 + $0x38] sm:$0xff]
        %v680 = vld [vmem:[%s558 + $0x40] sm:$0xff]
        %v681 = vld [vmem:[%s558 + $0x48] sm:$0xff]
        %v682 = vld [vmem:[%s558 + $0x50] sm:$0xff]
        %v683 = vld [vmem:[%s558 + $0x58] sm:$0xff]
        %v684 = vld [vmem:[%s558 + $0x60] sm:$0xff]
        %v685 = vld [vmem:[%s558 + $0x68] sm:$0xff]
        %v686 = vld [vmem:[%s558 + $0x70] sm:$0xff]
        %v687 = vld [vmem:[%s558 + $0x78] sm:$0xff]
        %688 = vset.pattern.permute.xlu0 0
        %689 = vperm.xlu0 %688, %v672
        %v690 = vpop.permute.xlu0 %689
        %691 = vset.pattern.permute.xlu0 0
        %692 = vperm.xlu0 %691, %v673
        %v693 = vpop.permute.xlu0 %692
        %694 = vset.pattern.permute.xlu0 0
        %695 = vperm.xlu0 %694, %v674
        %v696 = vpop.permute.xlu0 %695
        %697 = vset.pattern.permute.xlu0 0
        %698 = vperm.xlu0 %697, %v675
        %v699 = vpop.permute.xlu0 %698
        %700 = vset.pattern.permute.xlu0 0
        %701 = vperm.xlu0 %700, %v676
        %v702 = vpop.permute.xlu0 %701
        %703 = vset.pattern.permute.xlu0 0
        %704 = vperm.xlu0 %703, %v677
        %v705 = vpop.permute.xlu0 %704
        %706 = vset.pattern.permute.xlu0 0
        %707 = vperm.xlu0 %706, %v678
        %v708 = vpop.permute.xlu0 %707
        %709 = vset.pattern.permute.xlu0 0
        %710 = vperm.xlu0 %709, %v679
        %v711 = vpop.permute.xlu0 %710
        %712 = vset.pattern.permute.xlu0 0
        %713 = vperm.xlu0 %712, %v680
        %v714 = vpop.permute.xlu0 %713
        %715 = vset.pattern.permute.xlu0 0
        %716 = vperm.xlu0 %715, %v681
        %v717 = vpop.permute.xlu0 %716
        %718 = vset.pattern.permute.xlu0 0
        %719 = vperm.xlu0 %718, %v682
        %v720 = vpop.permute.xlu0 %719
        %721 = vset.pattern.permute.xlu0 0
        %722 = vperm.xlu0 %721, %v683
        %v723 = vpop.permute.xlu0 %722
        %724 = vset.pattern.permute.xlu0 0
        %725 = vperm.xlu0 %724, %v684
        %v726 = vpop.permute.xlu0 %725
        %727 = vset.pattern.permute.xlu0 0
        %728 = vperm.xlu0 %727, %v685
        %v729 = vpop.permute.xlu0 %728
        %730 = vset.pattern.permute.xlu0 0
        %731 = vperm.xlu0 %730, %v686
        %v732 = vpop.permute.xlu0 %731
        %733 = vset.pattern.permute.xlu0 0
        %734 = vperm.xlu0 %733, %v687
        %v735 = vpop.permute.xlu0 %734
        %vm736 = vcmp.eq.s32.totalorder %v607, %v690
        %vm737 = vcmp.eq.s32.totalorder %v607, %v693
        %vm738 = vcmp.eq.s32.totalorder %v607, %v696
        %vm739 = vcmp.eq.s32.totalorder %v607, %v699
        %vm740 = vcmp.eq.s32.totalorder %v607, %v702
        %vm741 = vcmp.eq.s32.totalorder %v607, %v705
        %vm742 = vcmp.eq.s32.totalorder %v607, %v708
        %vm743 = vcmp.eq.s32.totalorder %v607, %v711
        %vm744 = vcmp.eq.s32.totalorder %v607, %v714
        %vm745 = vcmp.eq.s32.totalorder %v607, %v717
        %vm746 = vcmp.eq.s32.totalorder %v607, %v720
        %vm747 = vcmp.eq.s32.totalorder %v607, %v723
        %vm748 = vcmp.eq.s32.totalorder %v607, %v726
        %vm749 = vcmp.eq.s32.totalorder %v607, %v729
        %vm750 = vcmp.eq.s32.totalorder %v607, %v732
        %vm751 = vcmp.eq.s32.totalorder %v607, %v735
        %v752 = vsel %vm656, 1, 0
        %v753 = vsel %vm657, 1, 0
        %v754 = vsel %vm658, 1, 0
        %v755 = vsel %vm659, 1, 0
        %v756 = vsel %vm660, 1, 0
        %v757 = vsel %vm661, 1, 0
        %v758 = vsel %vm662, 1, 0
        %v759 = vsel %vm663, 1, 0
        %v760 = vsel %vm664, 1, 0
        %v761 = vsel %vm665, 1, 0
        %v762 = vsel %vm666, 1, 0
        %v763 = vsel %vm667, 1, 0
        %v764 = vsel %vm668, 1, 0
        %v765 = vsel %vm669, 1, 0
        %v766 = vsel %vm670, 1, 0
        %v767 = vsel %vm671, 1, 0
        %v768 = vcvt.s32.f32 %v752
        %v769 = vcvt.s32.f32 %v753
        %v770 = vcvt.s32.f32 %v754
        %v771 = vcvt.s32.f32 %v755
        %v772 = vcvt.s32.f32 %v756
        %v773 = vcvt.s32.f32 %v757
        %v774 = vcvt.s32.f32 %v758
        %v775 = vcvt.s32.f32 %v759
        %v776 = vcvt.s32.f32 %v760
        %v777 = vcvt.s32.f32 %v761
        %v778 = vcvt.s32.f32 %v762
        %v779 = vcvt.s32.f32 %v763
        %v780 = vcvt.s32.f32 %v764
        %v781 = vcvt.s32.f32 %v765
        %v782 = vcvt.s32.f32 %v766
        %v783 = vcvt.s32.f32 %v767
        %v784 = vpack.c.bf16 %v769, %v768
        %v785 = vpack.c.bf16 %v771, %v770
        %v786 = vpack.c.bf16 %v773, %v772
        %v787 = vpack.c.bf16 %v775, %v774
        %v788 = vpack.c.bf16 %v777, %v776
        %v789 = vpack.c.bf16 %v779, %v778
        %v790 = vpack.c.bf16 %v781, %v780
        %v791 = vpack.c.bf16 %v783, %v782
        %v792 = vsel %vm736, 1, 0
        %v793 = vsel %vm737, 1, 0
        %v794 = vsel %vm738, 1, 0
        %v795 = vsel %vm739, 1, 0
        %v796 = vsel %vm740, 1, 0
        %v797 = vsel %vm741, 1, 0
        %v798 = vsel %vm742, 1, 0
        %v799 = vsel %vm743, 1, 0
        %v800 = vsel %vm744, 1, 0
        %v801 = vsel %vm745, 1, 0
        %v802 = vsel %vm746, 1, 0
        %v803 = vsel %vm747, 1, 0
        %v804 = vsel %vm748, 1, 0
        %v805 = vsel %vm749, 1, 0
        %v806 = vsel %vm750, 1, 0
        %v807 = vsel %vm751, 1, 0
        %v808 = vcvt.s32.f32 %v792
        %v809 = vcvt.s32.f32 %v793
        %v810 = vcvt.s32.f32 %v794
        %v811 = vcvt.s32.f32 %v795
        %v812 = vcvt.s32.f32 %v796
        %v813 = vcvt.s32.f32 %v797
        %v814 = vcvt.s32.f32 %v798
        %v815 = vcvt.s32.f32 %v799
        %v816 = vcvt.s32.f32 %v800
        %v817 = vcvt.s32.f32 %v801
        %v818 = vcvt.s32.f32 %v802
        %v819 = vcvt.s32.f32 %v803
        %v820 = vcvt.s32.f32 %v804
        %v821 = vcvt.s32.f32 %v805
        %v822 = vcvt.s32.f32 %v806
        %v823 = vcvt.s32.f32 %v807
        %v824 = vpack.c.bf16 %v809, %v808
        %v825 = vpack.c.bf16 %v811, %v810
        %v826 = vpack.c.bf16 %v813, %v812
        %v827 = vpack.c.bf16 %v815, %v814
        %v828 = vpack.c.bf16 %v817, %v816
        %v829 = vpack.c.bf16 %v819, %v818
        %v830 = vpack.c.bf16 %v821, %v820
        %v831 = vpack.c.bf16 %v823, %v822
        %v832 = vld [vmem:[%s5] sm:$0xf]
        %v833 = vld [vmem:[%s5 + $0x4] sm:$0xf]
        %v834 = vld [vmem:[%s5 + $0x8] sm:$0xf]
        %v835 = vld [vmem:[%s5 + $0xc] sm:$0xf]
        %v836 = vld [vmem:[%s5 + $0x10] sm:$0xf]
        %v837 = vld [vmem:[%s5 + $0x14] sm:$0xf]
        %v838 = vld [vmem:[%s5 + $0x18] sm:$0xf]
        %v839 = vld [vmem:[%s5 + $0x1c] sm:$0xf]
        %v840 = vld [vmem:[%s5 + $0x20] sm:$0xf]
        %v841 = vld [vmem:[%s5 + $0x24] sm:$0xf]
        %v842 = vld [vmem:[%s5 + $0x28] sm:$0xf]
        %v843 = vld [vmem:[%s5 + $0x2c] sm:$0xf]
        %v844 = vld [vmem:[%s5 + $0x30] sm:$0xf]
        %v845 = vld [vmem:[%s5 + $0x34] sm:$0xf]
        %v846 = vld [vmem:[%s5 + $0x38] sm:$0xf]
        %v847 = vld [vmem:[%s5 + $0x3c] sm:$0xf]
        %v848 = vld [vmem:[%s6] sm:$0xf]
        %v849 = vld [vmem:[%s6 + $0x4] sm:$0xf]
        %v850 = vld [vmem:[%s6 + $0x8] sm:$0xf]
        %v851 = vld [vmem:[%s6 + $0xc] sm:$0xf]
        %v852 = vld [vmem:[%s6 + $0x10] sm:$0xf]
        %v853 = vld [vmem:[%s6 + $0x14] sm:$0xf]
        %v854 = vld [vmem:[%s6 + $0x18] sm:$0xf]
        %v855 = vld [vmem:[%s6 + $0x1c] sm:$0xf]
        %v856 = vld [vmem:[%s6 + $0x20] sm:$0xf]
        %v857 = vld [vmem:[%s6 + $0x24] sm:$0xf]
        %v858 = vld [vmem:[%s6 + $0x28] sm:$0xf]
        %v859 = vld [vmem:[%s6 + $0x2c] sm:$0xf]
        %v860 = vld [vmem:[%s6 + $0x30] sm:$0xf]
        %v861 = vld [vmem:[%s6 + $0x34] sm:$0xf]
        %v862 = vld [vmem:[%s6 + $0x38] sm:$0xf]
        %v863 = vld [vmem:[%s6 + $0x3c] sm:$0xf]
        %v880 = vunpack.c.l.b16 %v848
        %v881 = vunpack.c.l.b16 %v849
        %v882 = vunpack.c.l.b16 %v850
        %v883 = vunpack.c.l.b16 %v851
        %v884 = vunpack.c.l.b16 %v852
        %v885 = vunpack.c.l.b16 %v853
        %v886 = vunpack.c.l.b16 %v854
        %v887 = vunpack.c.l.b16 %v855
        %v888 = vunpack.c.l.b16 %v856
        %v889 = vunpack.c.l.b16 %v857
        %v890 = vunpack.c.l.b16 %v858
        %v891 = vunpack.c.l.b16 %v859
        %v892 = vunpack.c.l.b16 %v860
        %v893 = vunpack.c.l.b16 %v861
        %v894 = vunpack.c.l.b16 %v862
        %v895 = vunpack.c.l.b16 %v863
        %v896 = vpack.c.b16 %v881, %v880
        %v897 = vpack.c.b16 %v883, %v882
        %v898 = vpack.c.b16 %v885, %v884
        %v899 = vpack.c.b16 %v887, %v886
        %v900 = vpack.c.b16 %v889, %v888
        %v901 = vpack.c.b16 %v891, %v890
        %v902 = vpack.c.b16 %v893, %v892
        %v903 = vpack.c.b16 %v895, %v894
        %912 = vmatprep.subr.bf16.mxu0 0
        %913 = vmatpush1.bf16.msra.mxu0 %v896
        %914 = vmatprep.subr.bf16.mxu0 0
        %915 = vmatpush1.bf16.msra.mxu0 %v897
        %916 = vmatprep.subr.bf16.mxu0 0
        %917 = vmatpush1.bf16.msra.mxu0 %v898
        %918 = vmatprep.subr.bf16.mxu0 0
        %919 = vmatpush1.bf16.msra.mxu0 %v899
        %920 = vmatprep.subr.bf16.mxu0 0
        %921 = vmatpush1.bf16.msra.mxu0 %v900
        %922 = vmatprep.subr.bf16.mxu0 0
        %923 = vmatpush1.bf16.msra.mxu0 %v901
        %924 = vmatprep.subr.bf16.mxu0 0
        %925 = vmatpush1.bf16.msra.mxu0 %v902
        %926 = vmatprep.subr.bf16.mxu0 0
        %927 = vmatpush1.bf16.msra.mxu0 %v903
        %928 = vmatprep.subr.bf16.mxu0 0
        %929 = vmatpush1.bf16.msra.mxu0 0
        %930 = vmatprep.subr.bf16.mxu0 0
        %931 = vmatpush1.bf16.msra.mxu0 0
        %932 = vmatprep.subr.bf16.mxu0 0
        %933 = vmatpush1.bf16.msra.mxu0 0
        %934 = vmatprep.subr.bf16.mxu0 0
        %935 = vmatpush1.bf16.msra.mxu0 0
        %936 = vmatprep.subr.bf16.mxu0 0
        %937 = vmatpush1.bf16.msra.mxu0 0
        %938 = vmatprep.subr.bf16.mxu0 0
        %939 = vmatpush1.bf16.msra.mxu0 0
        %940 = vmatprep.subr.bf16.mxu0 0
        %941 = vmatpush1.bf16.msra.mxu0 0
        %942 = vmatprep.subr.bf16.mxu0 0
        %943 = vmatpush1.bf16.msra.mxu0 0
        %944 = vmatprep.mubr.bf16.mxu0 0
        %945 = vmatmul.mubr.bf16.gmra.mrb[0].mxu0 %v824
        %v946 = vpop.f32.mrb[0].mxu0
        %v947 = vadd.f32 0.0, %v946
        %v948 = vpop.f32.mrb[0].mxu0
        %v949 = vpop.f32.mrb[0].mxu0
        %v950 = vadd.f32 0.0, %v949
        %v951 = vpop.f32.mrb[0].mxu0
        %952 = vmatprep.mubr.bf16.mxu0 0
        %953 = vmatmul.mubr.bf16.gmra.mrb[0].mxu0 %v825
        %v954 = vpop.f32.mrb[0].mxu0
        %v955 = vadd.f32 0.0, %v954
        %v956 = vpop.f32.mrb[0].mxu0
        %v957 = vpop.f32.mrb[0].mxu0
        %v958 = vadd.f32 0.0, %v957
        %v959 = vpop.f32.mrb[0].mxu0
        %960 = vmatprep.mubr.bf16.mxu0 0
        %961 = vmatmul.mubr.bf16.gmra.mrb[0].mxu0 %v826
        %v962 = vpop.f32.mrb[0].mxu0
        %v963 = vadd.f32 0.0, %v962
        %v964 = vpop.f32.mrb[0].mxu0
        %v965 = vpop.f32.mrb[0].mxu0
        %v966 = vadd.f32 0.0, %v965
        %v967 = vpop.f32.mrb[0].mxu0
        %968 = vmatprep.mubr.bf16.mxu0 0
        %969 = vmatmul.mubr.bf16.gmra.mrb[0].mxu0 %v827
        %v970 = vpop.f32.mrb[0].mxu0
        %v971 = vadd.f32 0.0, %v970
        %v972 = vpop.f32.mrb[0].mxu0
        %v973 = vpop.f32.mrb[0].mxu0
        %v974 = vadd.f32 0.0, %v973
        %v975 = vpop.f32.mrb[0].mxu0
        %976 = vmatprep.mubr.bf16.mxu0 0
        %977 = vmatmul.mubr.bf16.gmra.mrb[0].mxu0 %v828
        %v978 = vpop.f32.mrb[0].mxu0
        %v979 = vadd.f32 0.0, %v978
        %v980 = vpop.f32.mrb[0].mxu0
        %v981 = vpop.f32.mrb[0].mxu0
        %v982 = vadd.f32 0.0, %v981
        %v983 = vpop.f32.mrb[0].mxu0
        %984 = vmatprep.mubr.bf16.mxu0 0
        %985 = vmatmul.mubr.bf16.gmra.mrb[0].mxu0 %v829
        %v986 = vpop.f32.mrb[0].mxu0
        %v987 = vadd.f32 0.0, %v986
        %v988 = vpop.f32.mrb[0].mxu0
        %v989 = vpop.f32.mrb[0].mxu0
        %v990 = vadd.f32 0.0, %v989
        %v991 = vpop.f32.mrb[0].mxu0
        %992 = vmatprep.mubr.bf16.mxu0 0
        %993 = vmatmul.mubr.bf16.gmra.mrb[0].mxu0 %v830
        %v994 = vpop.f32.mrb[0].mxu0
        %v995 = vadd.f32 0.0, %v994
        %v996 = vpop.f32.mrb[0].mxu0
        %v997 = vpop.f32.mrb[0].mxu0
        %v998 = vadd.f32 0.0, %v997
        %v999 = vpop.f32.mrb[0].mxu0
        %1000 = vmatprep.mubr.bf16.mxu0 0
        %1001 = vmatmul.mubr.bf16.gmra.mrb[0].mxu0 %v831
        %v1002 = vpop.f32.mrb[0].mxu0
        %v1003 = vadd.f32 0.0, %v1002
        %v1004 = vpop.f32.mrb[0].mxu0
        %v1005 = vpop.f32.mrb[0].mxu0
        %v1006 = vadd.f32 0.0, %v1005
        %v1007 = vpop.f32.mrb[0].mxu0
        %1008 = vdwg.mxu0
        %v1025 = vunpack.c.l.b16 %v832
        %v1026 = vunpack.c.l.b16 %v833
        %v1027 = vunpack.c.l.b16 %v834
        %v1028 = vunpack.c.l.b16 %v835
        %v1029 = vunpack.c.l.b16 %v836
        %v1030 = vunpack.c.l.b16 %v837
        %v1031 = vunpack.c.l.b16 %v838
        %v1032 = vunpack.c.l.b16 %v839
        %v1033 = vunpack.c.l.b16 %v840
        %v1034 = vunpack.c.l.b16 %v841
        %v1035 = vunpack.c.l.b16 %v842
        %v1036 = vunpack.c.l.b16 %v843
        %v1037 = vunpack.c.l.b16 %v844
        %v1038 = vunpack.c.l.b16 %v845
        %v1039 = vunpack.c.l.b16 %v846
        %v1040 = vunpack.c.l.b16 %v847
        %v1041 = vpack.c.b16 %v1026, %v1025
        %v1042 = vpack.c.b16 %v1028, %v1027
        %v1043 = vpack.c.b16 %v1030, %v1029
        %v1044 = vpack.c.b16 %v1032, %v1031
        %v1045 = vpack.c.b16 %v1034, %v1033
        %v1046 = vpack.c.b16 %v1036, %v1035
        %v1047 = vpack.c.b16 %v1038, %v1037
        %v1048 = vpack.c.b16 %v1040, %v1039
        %1057 = vmatprep.subr.bf16.mxu0 0
        %1058 = vmatpush1.bf16.msra.mxu0 %v1041
        %1059 = vmatprep.subr.bf16.mxu0 0
        %1060 = vmatpush1.bf16.msra.mxu0 %v1042
        %1061 = vmatprep.subr.bf16.mxu0 0
        %1062 = vmatpush1.bf16.msra.mxu0 %v1043
        %1063 = vmatprep.subr.bf16.mxu0 0
        %1064 = vmatpush1.bf16.msra.mxu0 %v1044
        %1065 = vmatprep.subr.bf16.mxu0 0
        %1066 = vmatpush1.bf16.msra.mxu0 %v1045
        %1067 = vmatprep.subr.bf16.mxu0 0
        %1068 = vmatpush1.bf16.msra.mxu0 %v1046
        %1069 = vmatprep.subr.bf16.mxu0 0
        %1070 = vmatpush1.bf16.msra.mxu0 %v1047
        %1071 = vmatprep.subr.bf16.mxu0 0
        %1072 = vmatpush1.bf16.msra.mxu0 %v1048
        %1073 = vmatprep.subr.bf16.mxu0 0
        %1074 = vmatpush1.bf16.msra.mxu0 0
        %1075 = vmatprep.subr.bf16.mxu0 0
        %1076 = vmatpush1.bf16.msra.mxu0 0
        %1077 = vmatprep.subr.bf16.mxu0 0
        %1078 = vmatpush1.bf16.msra.mxu0 0
        %1079 = vmatprep.subr.bf16.mxu0 0
        %1080 = vmatpush1.bf16.msra.mxu0 0
        %1081 = vmatprep.subr.bf16.mxu0 0
        %1082 = vmatpush1.bf16.msra.mxu0 0
        %1083 = vmatprep.subr.bf16.mxu0 0
        %1084 = vmatpush1.bf16.msra.mxu0 0
        %1085 = vmatprep.subr.bf16.mxu0 0
        %1086 = vmatpush1.bf16.msra.mxu0 0
        %1087 = vmatprep.subr.bf16.mxu0 0
        %1088 = vmatpush1.bf16.msra.mxu0 0
        %1089 = vmatprep.mubr.bf16.mxu0 0
        %1090 = vmatmul.mubr.bf16.gmra.mrb[0].mxu0 %v784
        %v1091 = vpop.f32.mrb[0].mxu0
        %v1092 = vadd.f32 %v947, %v1091
        %v1093 = vpop.f32.mrb[0].mxu0
        %v1094 = vpop.f32.mrb[0].mxu0
        %v1095 = vadd.f32 %v950, %v1094
        %v1096 = vpop.f32.mrb[0].mxu0
        %1097 = vmatprep.mubr.bf16.mxu0 0
        %1098 = vmatmul.mubr.bf16.gmra.mrb[0].mxu0 %v785
        %v1099 = vpop.f32.mrb[0].mxu0
        %v1100 = vadd.f32 %v955, %v1099
        %v1101 = vpop.f32.mrb[0].mxu0
        %v1102 = vpop.f32.mrb[0].mxu0
        %v1103 = vadd.f32 %v958, %v1102
        %v1104 = vpop.f32.mrb[0].mxu0
        %1105 = vmatprep.mubr.bf16.mxu0 0
        %1106 = vmatmul.mubr.bf16.gmra.mrb[0].mxu0 %v786
        %v1107 = vpop.f32.mrb[0].mxu0
        %v1108 = vadd.f32 %v963, %v1107
        %v1109 = vpop.f32.mrb[0].mxu0
        %v1110 = vpop.f32.mrb[0].mxu0
        %v1111 = vadd.f32 %v966, %v1110
        %v1112 = vpop.f32.mrb[0].mxu0
        %1113 = vmatprep.mubr.bf16.mxu0 0
        %1114 = vmatmul.mubr.bf16.gmra.mrb[0].mxu0 %v787
        %v1115 = vpop.f32.mrb[0].mxu0
        %v1116 = vadd.f32 %v971, %v1115
        %v1117 = vpop.f32.mrb[0].mxu0
        %v1118 = vpop.f32.mrb[0].mxu0
        %v1119 = vadd.f32 %v974, %v1118
        %v1120 = vpop.f32.mrb[0].mxu0
        %1121 = vmatprep.mubr.bf16.mxu0 0
        %1122 = vmatmul.mubr.bf16.gmra.mrb[0].mxu0 %v788
        %v1123 = vpop.f32.mrb[0].mxu0
        %v1124 = vadd.f32 %v979, %v1123
        %v1125 = vpop.f32.mrb[0].mxu0
        %v1126 = vpop.f32.mrb[0].mxu0
        %v1127 = vadd.f32 %v982, %v1126
        %v1128 = vpop.f32.mrb[0].mxu0
        %1129 = vmatprep.mubr.bf16.mxu0 0
        %1130 = vmatmul.mubr.bf16.gmra.mrb[0].mxu0 %v789
        %v1131 = vpop.f32.mrb[0].mxu0
        %v1132 = vadd.f32 %v987, %v1131
        %v1133 = vpop.f32.mrb[0].mxu0
        %v1134 = vpop.f32.mrb[0].mxu0
        %v1135 = vadd.f32 %v990, %v1134
        %v1136 = vpop.f32.mrb[0].mxu0
        %1137 = vmatprep.mubr.bf16.mxu0 0
        %1138 = vmatmul.mubr.bf16.gmra.mrb[0].mxu0 %v790
        %v1139 = vpop.f32.mrb[0].mxu0
        %v1140 = vadd.f32 %v995, %v1139
        %v1141 = vpop.f32.mrb[0].mxu0
        %v1142 = vpop.f32.mrb[0].mxu0
        %v1143 = vadd.f32 %v998, %v1142
        %v1144 = vpop.f32.mrb[0].mxu0
        %1145 = vmatprep.mubr.bf16.mxu0 0
        %1146 = vmatmul.mubr.bf16.gmra.mrb[0].mxu0 %v791
        %v1147 = vpop.f32.mrb[0].mxu0
        %v1148 = vadd.f32 %v1003, %v1147
        %v1149 = vpop.f32.mrb[0].mxu0
        %v1150 = vpop.f32.mrb[0].mxu0
        %v1151 = vadd.f32 %v1006, %v1150
        %v1152 = vpop.f32.mrb[0].mxu0
        %1153 = vdwg.mxu0
        %v1154 = vld [vmem:[%s568] sm:$0xff]
        %v1155 = vld [vmem:[%s568 + $0x8] sm:$0xff]
        %v1156 = vld [vmem:[%s568 + $0x10] sm:$0xff]
        %v1157 = vld [vmem:[%s568 + $0x18] sm:$0xff]
        %v1158 = vld [vmem:[%s568 + $0x20] sm:$0xff]
        %v1159 = vld [vmem:[%s568 + $0x28] sm:$0xff]
        %v1160 = vld [vmem:[%s568 + $0x30] sm:$0xff]
        %v1161 = vld [vmem:[%s568 + $0x38] sm:$0xff]
        %v1162 = vld [vmem:[%s568 + $0x40] sm:$0xff]
        %v1163 = vld [vmem:[%s568 + $0x48] sm:$0xff]
        %v1164 = vld [vmem:[%s568 + $0x50] sm:$0xff]
        %v1165 = vld [vmem:[%s568 + $0x58] sm:$0xff]
        %v1166 = vld [vmem:[%s568 + $0x60] sm:$0xff]
        %v1167 = vld [vmem:[%s568 + $0x68] sm:$0xff]
        %v1168 = vld [vmem:[%s568 + $0x70] sm:$0xff]
        %v1169 = vld [vmem:[%s568 + $0x78] sm:$0xff]
        %v1170 = vld [vmem:[%s7] sm:$0x3]
        %1172 = vset.pattern.permute.xlu0 0
        %1173 = vperm.xlu0 %1172, %v1154
        %v1174 = vpop.permute.xlu0 %1173
        %1177 = vset.pattern.permute.xlu0 0
        %1178 = vperm.xlu0 %1177, %v1155
        %v1179 = vpop.permute.xlu0 %1178
        %1182 = vset.pattern.permute.xlu0 0
        %1183 = vperm.xlu0 %1182, %v1156
        %v1184 = vpop.permute.xlu0 %1183
        %1187 = vset.pattern.permute.xlu0 0
        %1188 = vperm.xlu0 %1187, %v1157
        %v1189 = vpop.permute.xlu0 %1188
        %1192 = vset.pattern.permute.xlu0 0
        %1193 = vperm.xlu0 %1192, %v1158
        %v1194 = vpop.permute.xlu0 %1193
        %1197 = vset.pattern.permute.xlu0 0
        %1198 = vperm.xlu0 %1197, %v1159
        %v1199 = vpop.permute.xlu0 %1198
        %1202 = vset.pattern.permute.xlu0 0
        %1203 = vperm.xlu0 %1202, %v1160
        %v1204 = vpop.permute.xlu0 %1203
        %1207 = vset.pattern.permute.xlu0 0
        %1208 = vperm.xlu0 %1207, %v1161
        %v1209 = vpop.permute.xlu0 %1208
        %1212 = vset.pattern.permute.xlu0 0
        %1213 = vperm.xlu0 %1212, %v1162
        %v1214 = vpop.permute.xlu0 %1213
        %1217 = vset.pattern.permute.xlu0 0
        %1218 = vperm.xlu0 %1217, %v1163
        %v1219 = vpop.permute.xlu0 %1218
        %1222 = vset.pattern.permute.xlu0 0
        %1223 = vperm.xlu0 %1222, %v1164
        %v1224 = vpop.permute.xlu0 %1223
        %1227 = vset.pattern.permute.xlu0 0
        %1228 = vperm.xlu0 %1227, %v1165
        %v1229 = vpop.permute.xlu0 %1228
        %1232 = vset.pattern.permute.xlu0 0
        %1233 = vperm.xlu0 %1232, %v1166
        %v1234 = vpop.permute.xlu0 %1233
        %1237 = vset.pattern.permute.xlu0 0
        %1238 = vperm.xlu0 %1237, %v1167
        %v1239 = vpop.permute.xlu0 %1238
        %1242 = vset.pattern.permute.xlu0 0
        %1243 = vperm.xlu0 %1242, %v1168
        %v1244 = vpop.permute.xlu0 %1243
        %1247 = vset.pattern.permute.xlu0 0
        %1248 = vperm.xlu0 %1247, %v1169
        %v1249 = vpop.permute.xlu0 %1248
        %v1251 = vlaneseq
        %v1252 = vshrl.u32 %v1251, 7
        %v1253 = vsub.s32 0, %v1252
        %v1254 = vrot.slane %v1170, %v1253
        %v1255 = vmul.f32 %v1174, %v1254
        %v1256 = vmul.f32 %v1179, %v1254
        %v1257 = vmul.f32 %v1184, %v1254
        %v1258 = vmul.f32 %v1189, %v1254
        %v1259 = vmul.f32 %v1194, %v1254
        %v1260 = vmul.f32 %v1199, %v1254
        %v1261 = vmul.f32 %v1204, %v1254
        %v1262 = vmul.f32 %v1209, %v1254
        %v1263 = vmul.f32 %v1214, %v1254
        %v1264 = vmul.f32 %v1219, %v1254
        %v1265 = vmul.f32 %v1224, %v1254
        %v1266 = vmul.f32 %v1229, %v1254
        %v1267 = vmul.f32 %v1234, %v1254
        %v1268 = vmul.f32 %v1239, %v1254
        %v1269 = vmul.f32 %v1244, %v1254
        %v1270 = vmul.f32 %v1249, %v1254
        %v1271 = vadd.f32 %v1092, %v1255
        %v1272 = vadd.f32 %v1095, %v1256
        %v1273 = vadd.f32 %v1100, %v1257
        %v1274 = vadd.f32 %v1103, %v1258
        %v1275 = vadd.f32 %v1108, %v1259
        %v1276 = vadd.f32 %v1111, %v1260
        %v1277 = vadd.f32 %v1116, %v1261
        %v1278 = vadd.f32 %v1119, %v1262
        %v1279 = vadd.f32 %v1124, %v1263
        %v1280 = vadd.f32 %v1127, %v1264
        %v1281 = vadd.f32 %v1132, %v1265
        %v1282 = vadd.f32 %v1135, %v1266
        %v1283 = vadd.f32 %v1140, %v1267
        %v1284 = vadd.f32 %v1143, %v1268
        %v1285 = vadd.f32 %v1148, %v1269
        %v1286 = vadd.f32 %v1151, %v1270
        %1287 = vset.pattern.permute.xlu0 1
        %1288 = vperm.xlu0 %1287, %v1154
        %v1289 = vpop.permute.xlu0 %1288
        %1291 = vset.pattern.permute.xlu0 1
        %1292 = vperm.xlu0 %1291, %v1155
        %v1293 = vpop.permute.xlu0 %1292
        %1295 = vset.pattern.permute.xlu0 1
        %1296 = vperm.xlu0 %1295, %v1156
        %v1297 = vpop.permute.xlu0 %1296
        %1299 = vset.pattern.permute.xlu0 1
        %1300 = vperm.xlu0 %1299, %v1157
        %v1301 = vpop.permute.xlu0 %1300
        %1303 = vset.pattern.permute.xlu0 1
        %1304 = vperm.xlu0 %1303, %v1158
        %v1305 = vpop.permute.xlu0 %1304
        %1307 = vset.pattern.permute.xlu0 1
        %1308 = vperm.xlu0 %1307, %v1159
        %v1309 = vpop.permute.xlu0 %1308
        %1311 = vset.pattern.permute.xlu0 1
        %1312 = vperm.xlu0 %1311, %v1160
        %v1313 = vpop.permute.xlu0 %1312
        %1315 = vset.pattern.permute.xlu0 1
        %1316 = vperm.xlu0 %1315, %v1161
        %v1317 = vpop.permute.xlu0 %1316
        %1319 = vset.pattern.permute.xlu0 1
        %1320 = vperm.xlu0 %1319, %v1162
        %v1321 = vpop.permute.xlu0 %1320
        %1323 = vset.pattern.permute.xlu0 1
        %1324 = vperm.xlu0 %1323, %v1163
        %v1325 = vpop.permute.xlu0 %1324
        %1327 = vset.pattern.permute.xlu0 1
        %1328 = vperm.xlu0 %1327, %v1164
        %v1329 = vpop.permute.xlu0 %1328
        %1331 = vset.pattern.permute.xlu0 1
        %1332 = vperm.xlu0 %1331, %v1165
        %v1333 = vpop.permute.xlu0 %1332
        %1335 = vset.pattern.permute.xlu0 1
        %1336 = vperm.xlu0 %1335, %v1166
        %v1337 = vpop.permute.xlu0 %1336
        %1339 = vset.pattern.permute.xlu0 1
        %1340 = vperm.xlu0 %1339, %v1167
        %v1341 = vpop.permute.xlu0 %1340
        %1343 = vset.pattern.permute.xlu0 1
        %1344 = vperm.xlu0 %1343, %v1168
        %v1345 = vpop.permute.xlu0 %1344
        %1347 = vset.pattern.permute.xlu0 1
        %1348 = vperm.xlu0 %1347, %v1169
        %v1349 = vpop.permute.xlu0 %1348
        %v1351 = vlaneseq
        %v1352 = vshrl.u32 %v1351, 7
        %v1353 = vsub.s32 1, %v1352
        %v1354 = vrot.slane %v1170, %v1353
        %v1355 = vmul.f32 %v1289, %v1354
        %v1356 = vmul.f32 %v1293, %v1354
        %v1357 = vmul.f32 %v1297, %v1354
        %v1358 = vmul.f32 %v1301, %v1354
        %v1359 = vmul.f32 %v1305, %v1354
        %v1360 = vmul.f32 %v1309, %v1354
        %v1361 = vmul.f32 %v1313, %v1354
        %v1362 = vmul.f32 %v1317, %v1354
        %v1363 = vmul.f32 %v1321, %v1354
        %v1364 = vmul.f32 %v1325, %v1354
        %v1365 = vmul.f32 %v1329, %v1354
        %v1366 = vmul.f32 %v1333, %v1354
        %v1367 = vmul.f32 %v1337, %v1354
        %v1368 = vmul.f32 %v1341, %v1354
        %v1369 = vmul.f32 %v1345, %v1354
        %v1370 = vmul.f32 %v1349, %v1354
        %v1371 = vadd.f32 %v1271, %v1355
        %v1372 = vadd.f32 %v1272, %v1356
        %v1373 = vadd.f32 %v1273, %v1357
        %v1374 = vadd.f32 %v1274, %v1358
        %v1375 = vadd.f32 %v1275, %v1359
        %v1376 = vadd.f32 %v1276, %v1360
        %v1377 = vadd.f32 %v1277, %v1361
        %v1378 = vadd.f32 %v1278, %v1362
        %v1379 = vadd.f32 %v1279, %v1363
        %v1380 = vadd.f32 %v1280, %v1364
        %v1381 = vadd.f32 %v1281, %v1365
        %v1382 = vadd.f32 %v1282, %v1366
        %v1383 = vadd.f32 %v1283, %v1367
        %v1384 = vadd.f32 %v1284, %v1368
        %v1385 = vadd.f32 %v1285, %v1369
        %v1386 = vadd.f32 %v1286, %v1370
        %v1387 = vld [vmem:[%s8] sm:$0x1]
        %v1389 = vlaneseq
        %v1390 = vshrl.u32 %v1389, 7
        %v1391 = vsub.s32 0, %v1390
        %v1392 = vrot.slane %v1387, %v1391
        %v1394 = vadd.f32 %v1371, %v1392
        %v1395 = vadd.f32 %v1372, %v1392
        %v1396 = vadd.f32 %v1373, %v1392
        %v1397 = vadd.f32 %v1374, %v1392
        %v1398 = vadd.f32 %v1375, %v1392
        %v1399 = vadd.f32 %v1376, %v1392
        %v1400 = vadd.f32 %v1377, %v1392
        %v1401 = vadd.f32 %v1378, %v1392
        %v1402 = vadd.f32 %v1379, %v1392
        %v1403 = vadd.f32 %v1380, %v1392
        %v1404 = vadd.f32 %v1381, %v1392
        %v1405 = vadd.f32 %v1382, %v1392
        %v1406 = vadd.f32 %v1383, %v1392
        %v1407 = vadd.f32 %v1384, %v1392
        %v1408 = vadd.f32 %v1385, %v1392
        %v1409 = vadd.f32 %v1386, %v1392
        %v1410 = vmul.f32 %v1394, 0.5
        %v1411 = vmul.f32 %v1395, 0.5
        %v1412 = vmul.f32 %v1396, 0.5
        %v1413 = vmul.f32 %v1397, 0.5
        %v1414 = vmul.f32 %v1398, 0.5
        %v1415 = vmul.f32 %v1399, 0.5
        %v1416 = vmul.f32 %v1400, 0.5
        %v1417 = vmul.f32 %v1401, 0.5
        %v1418 = vmul.f32 %v1402, 0.5
        %v1419 = vmul.f32 %v1403, 0.5
        %v1420 = vmul.f32 %v1404, 0.5
        %v1421 = vmul.f32 %v1405, 0.5
        %v1422 = vmul.f32 %v1406, 0.5
        %v1423 = vmul.f32 %v1407, 0.5
        %v1424 = vmul.f32 %v1408, 0.5
        %v1425 = vmul.f32 %v1409, 0.5
        %v1426 = vtanh.pop %v1410
        %v1427 = vtanh.pop %v1411
        %v1428 = vtanh.pop %v1412
        %v1429 = vtanh.pop %v1413
        %v1430 = vtanh.pop %v1414
        %v1431 = vtanh.pop %v1415
        %v1432 = vtanh.pop %v1416
        %v1433 = vtanh.pop %v1417
        %v1434 = vtanh.pop %v1418
        %v1435 = vtanh.pop %v1419
        %v1436 = vtanh.pop %v1420
        %v1437 = vtanh.pop %v1421
        %v1438 = vtanh.pop %v1422
        %v1439 = vtanh.pop %v1423
        %v1440 = vtanh.pop %v1424
        %v1441 = vtanh.pop %v1425
        %v1442 = vmul.f32 %v1426, 0.5
        %v1443 = vmul.f32 %v1427, 0.5
        %v1444 = vmul.f32 %v1428, 0.5
        %v1445 = vmul.f32 %v1429, 0.5
        %v1446 = vmul.f32 %v1430, 0.5
        %v1447 = vmul.f32 %v1431, 0.5
        %v1448 = vmul.f32 %v1432, 0.5
        %v1449 = vmul.f32 %v1433, 0.5
        %v1450 = vmul.f32 %v1434, 0.5
        %v1451 = vmul.f32 %v1435, 0.5
        %v1452 = vmul.f32 %v1436, 0.5
        %v1453 = vmul.f32 %v1437, 0.5
        %v1454 = vmul.f32 %v1438, 0.5
        %v1455 = vmul.f32 %v1439, 0.5
        %v1456 = vmul.f32 %v1440, 0.5
        %v1457 = vmul.f32 %v1441, 0.5
        %v1458 = vadd.f32 %v1442, 0.5
        %v1459 = vadd.f32 %v1443, 0.5
        %v1460 = vadd.f32 %v1444, 0.5
        %v1461 = vadd.f32 %v1445, 0.5
        %v1462 = vadd.f32 %v1446, 0.5
        %v1463 = vadd.f32 %v1447, 0.5
        %v1464 = vadd.f32 %v1448, 0.5
        %v1465 = vadd.f32 %v1449, 0.5
        %v1466 = vadd.f32 %v1450, 0.5
        %v1467 = vadd.f32 %v1451, 0.5
        %v1468 = vadd.f32 %v1452, 0.5
        %v1469 = vadd.f32 %v1453, 0.5
        %v1470 = vadd.f32 %v1454, 0.5
        %v1471 = vadd.f32 %v1455, 0.5
        %v1472 = vadd.f32 %v1456, 0.5
        %v1473 = vadd.f32 %v1457, 0.5
        %v1474 = vmul.f32 %v1394, %v1458
        %v1475 = vmul.f32 %v1395, %v1459
        %v1476 = vmul.f32 %v1396, %v1460
        %v1477 = vmul.f32 %v1397, %v1461
        %v1478 = vmul.f32 %v1398, %v1462
        %v1479 = vmul.f32 %v1399, %v1463
        %v1480 = vmul.f32 %v1400, %v1464
        %v1481 = vmul.f32 %v1401, %v1465
        %v1482 = vmul.f32 %v1402, %v1466
        %v1483 = vmul.f32 %v1403, %v1467
        %v1484 = vmul.f32 %v1404, %v1468
        %v1485 = vmul.f32 %v1405, %v1469
        %v1486 = vmul.f32 %v1406, %v1470
        %v1487 = vmul.f32 %v1407, %v1471
        %v1488 = vmul.f32 %v1408, %v1472
        %v1489 = vmul.f32 %v1409, %v1473
        %v1490 = vpack.c.bf16 %v1475, %v1474
        %v1491 = vpack.c.bf16 %v1477, %v1476
        %v1492 = vpack.c.bf16 %v1479, %v1478
        %v1493 = vpack.c.bf16 %v1481, %v1480
        %v1494 = vpack.c.bf16 %v1483, %v1482
        %v1495 = vpack.c.bf16 %v1485, %v1484
        %v1496 = vpack.c.bf16 %v1487, %v1486
        %v1497 = vpack.c.bf16 %v1489, %v1488
        %v1498 = vld [vmem:[%s9] sm:$0xf]
        %v1499 = vld [vmem:[%s9 + $0x4] sm:$0xf]
        %v1500 = vld [vmem:[%s9 + $0x8] sm:$0xf]
        %v1501 = vld [vmem:[%s9 + $0xc] sm:$0xf]
        %v1502 = vld [vmem:[%s9 + $0x10] sm:$0xf]
        %v1503 = vld [vmem:[%s9 + $0x14] sm:$0xf]
        %v1504 = vld [vmem:[%s9 + $0x18] sm:$0xf]
        %v1505 = vld [vmem:[%s9 + $0x1c] sm:$0xf]
        %v1506 = vld [vmem:[%s9 + $0x20] sm:$0xf]
        %v1507 = vld [vmem:[%s9 + $0x24] sm:$0xf]
        %v1508 = vld [vmem:[%s9 + $0x28] sm:$0xf]
        %v1509 = vld [vmem:[%s9 + $0x2c] sm:$0xf]
        %v1510 = vld [vmem:[%s9 + $0x30] sm:$0xf]
        %v1511 = vld [vmem:[%s9 + $0x34] sm:$0xf]
        %v1512 = vld [vmem:[%s9 + $0x38] sm:$0xf]
        %v1513 = vld [vmem:[%s9 + $0x3c] sm:$0xf]
        %v1514 = vld [vmem:[%s10] sm:$0x1]
        %v1516 = vlaneseq
        %v1517 = vshrl.u32 %v1516, 7
        %v1518 = vsub.s32 0, %v1517
        %v1519 = vrot.slane %v1514, %v1518
        %v1537 = vunpack.c.l.b16 %v1498
        %v1538 = vunpack.c.l.b16 %v1499
        %v1539 = vunpack.c.l.b16 %v1500
        %v1540 = vunpack.c.l.b16 %v1501
        %v1541 = vunpack.c.l.b16 %v1502
        %v1542 = vunpack.c.l.b16 %v1503
        %v1543 = vunpack.c.l.b16 %v1504
        %v1544 = vunpack.c.l.b16 %v1505
        %v1545 = vunpack.c.l.b16 %v1506
        %v1546 = vunpack.c.l.b16 %v1507
        %v1547 = vunpack.c.l.b16 %v1508
        %v1548 = vunpack.c.l.b16 %v1509
        %v1549 = vunpack.c.l.b16 %v1510
        %v1550 = vunpack.c.l.b16 %v1511
        %v1551 = vunpack.c.l.b16 %v1512
        %v1552 = vunpack.c.l.b16 %v1513
        %v1553 = vpack.c.b16 %v1538, %v1537
        %v1554 = vpack.c.b16 %v1540, %v1539
        %v1555 = vpack.c.b16 %v1542, %v1541
        %v1556 = vpack.c.b16 %v1544, %v1543
        %v1557 = vpack.c.b16 %v1546, %v1545
        %v1558 = vpack.c.b16 %v1548, %v1547
        %v1559 = vpack.c.b16 %v1550, %v1549
        %v1560 = vpack.c.b16 %v1552, %v1551
        %1569 = vmatprep.subr.bf16.mxu0 0
        %1570 = vmatpush1.bf16.msra.mxu0 %v1553
        %1571 = vmatprep.subr.bf16.mxu0 0
        %1572 = vmatpush1.bf16.msra.mxu0 %v1554
        %1573 = vmatprep.subr.bf16.mxu0 0
        %1574 = vmatpush1.bf16.msra.mxu0 %v1555
        %1575 = vmatprep.subr.bf16.mxu0 0
        %1576 = vmatpush1.bf16.msra.mxu0 %v1556
        %1577 = vmatprep.subr.bf16.mxu0 0
        %1578 = vmatpush1.bf16.msra.mxu0 %v1557
        %1579 = vmatprep.subr.bf16.mxu0 0
        %1580 = vmatpush1.bf16.msra.mxu0 %v1558
        %1581 = vmatprep.subr.bf16.mxu0 0
        %1582 = vmatpush1.bf16.msra.mxu0 %v1559
        %1583 = vmatprep.subr.bf16.mxu0 0
        %1584 = vmatpush1.bf16.msra.mxu0 %v1560
        %1585 = vmatprep.subr.bf16.mxu0 0
        %1586 = vmatpush1.bf16.msra.mxu0 0
        %1587 = vmatprep.subr.bf16.mxu0 0
        %1588 = vmatpush1.bf16.msra.mxu0 0
        %1589 = vmatprep.subr.bf16.mxu0 0
        %1590 = vmatpush1.bf16.msra.mxu0 0
        %1591 = vmatprep.subr.bf16.mxu0 0
        %1592 = vmatpush1.bf16.msra.mxu0 0
        %1593 = vmatprep.subr.bf16.mxu0 0
        %1594 = vmatpush1.bf16.msra.mxu0 0
        %1595 = vmatprep.subr.bf16.mxu0 0
        %1596 = vmatpush1.bf16.msra.mxu0 0
        %1597 = vmatprep.subr.bf16.mxu0 0
        %1598 = vmatpush1.bf16.msra.mxu0 0
        %1599 = vmatprep.subr.bf16.mxu0 0
        %1600 = vmatpush1.bf16.msra.mxu0 0
        %1601 = vmatprep.mubr.bf16.mxu0 0
        %1602 = vmatmul.mubr.bf16.gmra.mrb[0].mxu0 %v1490
        %v1603 = vpop.f32.mrb[0].mxu0
        %v1604 = vadd.f32 %v1519, %v1603
        %v1605 = vpop.f32.mrb[0].mxu0
        %v1606 = vpop.f32.mrb[0].mxu0
        %v1607 = vadd.f32 %v1519, %v1606
        %v1608 = vpop.f32.mrb[0].mxu0
        %1609 = vmatprep.mubr.bf16.mxu0 0
        %1610 = vmatmul.mubr.bf16.gmra.mrb[0].mxu0 %v1491
        %v1611 = vpop.f32.mrb[0].mxu0
        %v1612 = vadd.f32 %v1519, %v1611
        %v1613 = vpop.f32.mrb[0].mxu0
        %v1614 = vpop.f32.mrb[0].mxu0
        %v1615 = vadd.f32 %v1519, %v1614
        %v1616 = vpop.f32.mrb[0].mxu0
        %1617 = vmatprep.mubr.bf16.mxu0 0
        %1618 = vmatmul.mubr.bf16.gmra.mrb[0].mxu0 %v1492
        %v1619 = vpop.f32.mrb[0].mxu0
        %v1620 = vadd.f32 %v1519, %v1619
        %v1621 = vpop.f32.mrb[0].mxu0
        %v1622 = vpop.f32.mrb[0].mxu0
        %v1623 = vadd.f32 %v1519, %v1622
        %v1624 = vpop.f32.mrb[0].mxu0
        %1625 = vmatprep.mubr.bf16.mxu0 0
        %1626 = vmatmul.mubr.bf16.gmra.mrb[0].mxu0 %v1493
        %v1627 = vpop.f32.mrb[0].mxu0
        %v1628 = vadd.f32 %v1519, %v1627
        %v1629 = vpop.f32.mrb[0].mxu0
        %v1630 = vpop.f32.mrb[0].mxu0
        %v1631 = vadd.f32 %v1519, %v1630
        %v1632 = vpop.f32.mrb[0].mxu0
        %1633 = vmatprep.mubr.bf16.mxu0 0
        %1634 = vmatmul.mubr.bf16.gmra.mrb[0].mxu0 %v1494
        %v1635 = vpop.f32.mrb[0].mxu0
        %v1636 = vadd.f32 %v1519, %v1635
        %v1637 = vpop.f32.mrb[0].mxu0
        %v1638 = vpop.f32.mrb[0].mxu0
        %v1639 = vadd.f32 %v1519, %v1638
        %v1640 = vpop.f32.mrb[0].mxu0
        %1641 = vmatprep.mubr.bf16.mxu0 0
        %1642 = vmatmul.mubr.bf16.gmra.mrb[0].mxu0 %v1495
        %v1643 = vpop.f32.mrb[0].mxu0
        %v1644 = vadd.f32 %v1519, %v1643
        %v1645 = vpop.f32.mrb[0].mxu0
        %v1646 = vpop.f32.mrb[0].mxu0
        %v1647 = vadd.f32 %v1519, %v1646
        %v1648 = vpop.f32.mrb[0].mxu0
        %1649 = vmatprep.mubr.bf16.mxu0 0
        %1650 = vmatmul.mubr.bf16.gmra.mrb[0].mxu0 %v1496
        %v1651 = vpop.f32.mrb[0].mxu0
        %v1652 = vadd.f32 %v1519, %v1651
        %v1653 = vpop.f32.mrb[0].mxu0
        %v1654 = vpop.f32.mrb[0].mxu0
        %v1655 = vadd.f32 %v1519, %v1654
        %v1656 = vpop.f32.mrb[0].mxu0
        %1657 = vmatprep.mubr.bf16.mxu0 0
        %1658 = vmatmul.mubr.bf16.gmra.mrb[0].mxu0 %v1497
        %v1659 = vpop.f32.mrb[0].mxu0
        %v1660 = vadd.f32 %v1519, %v1659
        %v1661 = vpop.f32.mrb[0].mxu0
        %v1662 = vpop.f32.mrb[0].mxu0
        %v1663 = vadd.f32 %v1519, %v1662
        %v1664 = vpop.f32.mrb[0].mxu0
        %1665 = vdwg.mxu0
        %v1666 = vmul.f32 %v1604, 0.5
        %v1667 = vmul.f32 %v1607, 0.5
        %v1668 = vmul.f32 %v1612, 0.5
        %v1669 = vmul.f32 %v1615, 0.5
        %v1670 = vmul.f32 %v1620, 0.5
        %v1671 = vmul.f32 %v1623, 0.5
        %v1672 = vmul.f32 %v1628, 0.5
        %v1673 = vmul.f32 %v1631, 0.5
        %v1674 = vmul.f32 %v1636, 0.5
        %v1675 = vmul.f32 %v1639, 0.5
        %v1676 = vmul.f32 %v1644, 0.5
        %v1677 = vmul.f32 %v1647, 0.5
        %v1678 = vmul.f32 %v1652, 0.5
        %v1679 = vmul.f32 %v1655, 0.5
        %v1680 = vmul.f32 %v1660, 0.5
        %v1681 = vmul.f32 %v1663, 0.5
        %v1682 = vtanh.pop %v1666
        %v1683 = vtanh.pop %v1667
        %v1684 = vtanh.pop %v1668
        %v1685 = vtanh.pop %v1669
        %v1686 = vtanh.pop %v1670
        %v1687 = vtanh.pop %v1671
        %v1688 = vtanh.pop %v1672
        %v1689 = vtanh.pop %v1673
        %v1690 = vtanh.pop %v1674
        %v1691 = vtanh.pop %v1675
        %v1692 = vtanh.pop %v1676
        %v1693 = vtanh.pop %v1677
        %v1694 = vtanh.pop %v1678
        %v1695 = vtanh.pop %v1679
        %v1696 = vtanh.pop %v1680
        %v1697 = vtanh.pop %v1681
        %v1698 = vmul.f32 %v1682, 0.5
        %v1699 = vmul.f32 %v1683, 0.5
        %v1700 = vmul.f32 %v1684, 0.5
        %v1701 = vmul.f32 %v1685, 0.5
        %v1702 = vmul.f32 %v1686, 0.5
        %v1703 = vmul.f32 %v1687, 0.5
        %v1704 = vmul.f32 %v1688, 0.5
        %v1705 = vmul.f32 %v1689, 0.5
        %v1706 = vmul.f32 %v1690, 0.5
        %v1707 = vmul.f32 %v1691, 0.5
        %v1708 = vmul.f32 %v1692, 0.5
        %v1709 = vmul.f32 %v1693, 0.5
        %v1710 = vmul.f32 %v1694, 0.5
        %v1711 = vmul.f32 %v1695, 0.5
        %v1712 = vmul.f32 %v1696, 0.5
        %v1713 = vmul.f32 %v1697, 0.5
        %v1714 = vadd.f32 %v1698, 0.5
        %v1715 = vadd.f32 %v1699, 0.5
        %v1716 = vadd.f32 %v1700, 0.5
        %v1717 = vadd.f32 %v1701, 0.5
        %v1718 = vadd.f32 %v1702, 0.5
        %v1719 = vadd.f32 %v1703, 0.5
        %v1720 = vadd.f32 %v1704, 0.5
        %v1721 = vadd.f32 %v1705, 0.5
        %v1722 = vadd.f32 %v1706, 0.5
        %v1723 = vadd.f32 %v1707, 0.5
        %v1724 = vadd.f32 %v1708, 0.5
        %v1725 = vadd.f32 %v1709, 0.5
        %v1726 = vadd.f32 %v1710, 0.5
        %v1727 = vadd.f32 %v1711, 0.5
        %v1728 = vadd.f32 %v1712, 0.5
        %v1729 = vadd.f32 %v1713, 0.5
        %v1730 = vmul.f32 %v1604, %v1714
        %v1731 = vmul.f32 %v1607, %v1715
        %v1732 = vmul.f32 %v1612, %v1716
        %v1733 = vmul.f32 %v1615, %v1717
        %v1734 = vmul.f32 %v1620, %v1718
        %v1735 = vmul.f32 %v1623, %v1719
        %v1736 = vmul.f32 %v1628, %v1720
        %v1737 = vmul.f32 %v1631, %v1721
        %v1738 = vmul.f32 %v1636, %v1722
        %v1739 = vmul.f32 %v1639, %v1723
        %v1740 = vmul.f32 %v1644, %v1724
        %v1741 = vmul.f32 %v1647, %v1725
        %v1742 = vmul.f32 %v1652, %v1726
        %v1743 = vmul.f32 %v1655, %v1727
        %v1744 = vmul.f32 %v1660, %v1728
        %v1745 = vmul.f32 %v1663, %v1729
        %v1746 = vld [vmem:[%s11] sm:$0x1]
        %v1748 = vlaneseq
        %v1749 = vshrl.u32 %v1748, 7
        %v1750 = vsub.s32 0, %v1749
        %v1751 = vrot.slane %v1746, %v1750
        %v1753 = vmul.f32 %v1730, %v1751
        %v1754 = vmul.f32 %v1731, %v1751
        %v1755 = vmul.f32 %v1732, %v1751
        %v1756 = vmul.f32 %v1733, %v1751
        %v1757 = vmul.f32 %v1734, %v1751
        %v1758 = vmul.f32 %v1735, %v1751
        %v1759 = vmul.f32 %v1736, %v1751
        %v1760 = vmul.f32 %v1737, %v1751
        %v1761 = vmul.f32 %v1738, %v1751
        %v1762 = vmul.f32 %v1739, %v1751
        %v1763 = vmul.f32 %v1740, %v1751
        %v1764 = vmul.f32 %v1741, %v1751
        %v1765 = vmul.f32 %v1742, %v1751
        %v1766 = vmul.f32 %v1743, %v1751
        %v1767 = vmul.f32 %v1744, %v1751
        %v1768 = vmul.f32 %v1745, %v1751
        %1769 = vadd.xlane.f32.xlu0 %v1753
        %v1770 = vpop.xlane.xlu0 %1769
        %1771 = vadd.xlane.f32.xlu0 %v1754
        %v1772 = vpop.xlane.xlu0 %1771
        %1773 = vadd.xlane.f32.xlu0 %v1755
        %v1774 = vpop.xlane.xlu0 %1773
        %1775 = vadd.xlane.f32.xlu0 %v1756
        %v1776 = vpop.xlane.xlu0 %1775
        %1777 = vadd.xlane.f32.xlu0 %v1757
        %v1778 = vpop.xlane.xlu0 %1777
        %1779 = vadd.xlane.f32.xlu0 %v1758
        %v1780 = vpop.xlane.xlu0 %1779
        %1781 = vadd.xlane.f32.xlu0 %v1759
        %v1782 = vpop.xlane.xlu0 %1781
        %1783 = vadd.xlane.f32.xlu0 %v1760
        %v1784 = vpop.xlane.xlu0 %1783
        %1785 = vadd.xlane.f32.xlu0 %v1761
        %v1786 = vpop.xlane.xlu0 %1785
        %1787 = vadd.xlane.f32.xlu0 %v1762
        %v1788 = vpop.xlane.xlu0 %1787
        %1789 = vadd.xlane.f32.xlu0 %v1763
        %v1790 = vpop.xlane.xlu0 %1789
        %1791 = vadd.xlane.f32.xlu0 %v1764
        %v1792 = vpop.xlane.xlu0 %1791
        %1793 = vadd.xlane.f32.xlu0 %v1765
        %v1794 = vpop.xlane.xlu0 %1793
        %1795 = vadd.xlane.f32.xlu0 %v1766
        %v1796 = vpop.xlane.xlu0 %1795
        %1797 = vadd.xlane.f32.xlu0 %v1767
        %v1798 = vpop.xlane.xlu0 %1797
        %1799 = vadd.xlane.f32.xlu0 %v1768
        %v1800 = vpop.xlane.xlu0 %1799
        %v1801 = vmul.f32 %v768, %v1770
        %v1802 = vmul.f32 %v769, %v1772
        %v1803 = vmul.f32 %v770, %v1774
        %v1804 = vmul.f32 %v771, %v1776
        %v1805 = vmul.f32 %v772, %v1778
        %v1806 = vmul.f32 %v773, %v1780
        %v1807 = vmul.f32 %v774, %v1782
        %v1808 = vmul.f32 %v775, %v1784
        %v1809 = vmul.f32 %v776, %v1786
        %v1810 = vmul.f32 %v777, %v1788
        %v1811 = vmul.f32 %v778, %v1790
        %v1812 = vmul.f32 %v779, %v1792
        %v1813 = vmul.f32 %v780, %v1794
        %v1814 = vmul.f32 %v781, %v1796
        %v1815 = vmul.f32 %v782, %v1798
        %v1816 = vmul.f32 %v783, %v1800
        %v1817 = vpack.c.bf16 %v1802, %v1801
        %v1818 = vpack.c.bf16 %v1804, %v1803
        %v1819 = vpack.c.bf16 %v1806, %v1805
        %v1820 = vpack.c.bf16 %v1808, %v1807
        %v1821 = vpack.c.bf16 %v1810, %v1809
        %v1822 = vpack.c.bf16 %v1812, %v1811
        %v1823 = vpack.c.bf16 %v1814, %v1813
        %v1824 = vpack.c.bf16 %v1816, %v1815
        %v1825 = vld [vmem:[%s535] sm:$0xff]
        %v1826 = vld [vmem:[%s577] sm:$0xf]
        %1827 = vmatprep.subr.bf16.mxu0 0
        %1828 = vmatpush1.bf16.msra.mxu0 %v1817
        %1829 = vmatprep.subr.bf16.mxu0 0
        %1830 = vmatpush1.bf16.msra.mxu0 %v1818
        %1831 = vmatprep.subr.bf16.mxu0 0
        %1832 = vmatpush1.bf16.msra.mxu0 %v1819
        %1833 = vmatprep.subr.bf16.mxu0 0
        %1834 = vmatpush1.bf16.msra.mxu0 %v1820
        %1835 = vmatprep.subr.bf16.mxu0 0
        %1836 = vmatpush1.bf16.msra.mxu0 %v1821
        %1837 = vmatprep.subr.bf16.mxu0 0
        %1838 = vmatpush1.bf16.msra.mxu0 %v1822
        %1839 = vmatprep.subr.bf16.mxu0 0
        %1840 = vmatpush1.bf16.msra.mxu0 %v1823
        %1841 = vmatprep.subr.bf16.mxu0 0
        %1842 = vmatpush1.bf16.msra.mxu0 %v1824
        %1843 = vmatprep.subr.bf16.mxu0 0
        %1844 = vmatpush1.bf16.msra.mxu0 0
        %1845 = vmatprep.subr.bf16.mxu0 0
        %1846 = vmatpush1.bf16.msra.mxu0 0
        %1847 = vmatprep.subr.bf16.mxu0 0
        %1848 = vmatpush1.bf16.msra.mxu0 0
        %1849 = vmatprep.subr.bf16.mxu0 0
        %1850 = vmatpush1.bf16.msra.mxu0 0
        %1851 = vmatprep.subr.bf16.mxu0 0
        %1852 = vmatpush1.bf16.msra.mxu0 0
        %1853 = vmatprep.subr.bf16.mxu0 0
        %1854 = vmatpush1.bf16.msra.mxu0 0
        %1855 = vmatprep.subr.bf16.mxu0 0
        %1856 = vmatpush1.bf16.msra.mxu0 0
        %1857 = vmatprep.subr.bf16.mxu0 0
        %1858 = vmatpush1.bf16.msra.mxu0 0
        %1859 = vmatprep.mubr.bf16.mxu0 0
        %1860 = vmatmul.mubr.bf16.gmra.mrb[0].mxu0 %v1826
        %v1861 = vpop.f32.mrb[0].mxu0
        %v1862 = vadd.f32 0.0, %v1861
        %v1863 = vpop.f32.mrb[0].mxu0
        %v1864 = vpop.f32.mrb[0].mxu0
        %v1865 = vpop.f32.mrb[0].mxu0
        %1866 = vdwg.mxu0
        %v1867 = vadd.f32 %v1825, %v1862
        %1868 = vst [vmem:[%s535] sm:$0xff] %v1867
        %s1869 = sand.u32 %s339, 1
        %s1870 = scalar_lea.sflag [#allocation3], %s1869
        %s1871 = sand.u32 %s339, 1
        %s1872 = smul.addr %s1871, 8
        %s1873 = scalar_lea.vmem [#allocation2], %s1872
        %s1874 = sand.u32 %s365, 1
        %s1875 = scalar_lea.sflag [#allocation5], %s1874
        %s1876 = sand.u32 %s365, 1
        %s1877 = scalar_lea.vmem [#allocation4], %s1876
        // Predicated region
        $region73: #{tpu_custom_call.1} parent=67 // pred_check
          %p1878 = pneg %p349
        $region74: #{tpu_custom_call.1} parent=67 // pred_check_branch
          %1880 = sbr.rel (%p1878) target = $region76
        $region75: #{tpu_custom_call.1} parent=67 // pred_region
          %s1882 = ssub.s32 128, 128
          %1883 = vsyncadd %s1870, %s1882
          %s1884 = smul.addr %s35, 128
          %s1885 = scalar_lea.hbm %s12, %s1884
          %s1887 = sshll.u32 %s1873, 4
          %s1888 = int_to_ptr.vmem [resolvable:$true] %s1887
          %1890 = dma.vmem_to_hbm [thread:$0]  %s1888, 128, %s1885, %s1870
        $region76: #{tpu_custom_call.1} parent=67 // pred_fallthru
          _
        // Predicated region
        $region77: #{tpu_custom_call.1} parent=67 // pred_check
          %p1891 = pneg %p375
        $region78: #{tpu_custom_call.1} parent=67 // pred_check_branch
          %1893 = sbr.rel (%p1891) target = $region80
        $region79: #{tpu_custom_call.1} parent=67 // pred_region
          %s1895 = ssub.s32 16, 16
          %1896 = vsyncadd %s1875, %s1895
          %s1897 = smul.addr %s35, 16
          %s1898 = scalar_lea.hbm %s13, %s1897
          %s1900 = sshll.u32 %s1877, 4
          %s1901 = int_to_ptr.vmem [resolvable:$true] %s1900
          %1903 = dma.vmem_to_hbm [thread:$0]  %s1901, 16, %s1898, %s1875
        $region80: #{tpu_custom_call.1} parent=67 // pred_fallthru
          _
      $region68: #{tpu_custom_call.1} parent=5 // pred_fallthru
        _
      %p1904 = scmp.le.s32.totalorder 2, %s26
      // Predicated region
      $region81: #{tpu_custom_call.1} parent=5 // pred_check
        %p1905 = pneg %p1904
      $region82: #{tpu_custom_call.1} parent=5 // pred_check_branch
        %1907 = sbr.rel (%p1905) target = $region84
      $region83: #{tpu_custom_call.1} parent=5 // pred_region
        %s1908 = ssub.s32 %s26, 2
        // Predicated region
        $region85: #{tpu_custom_call.1} parent=83 // pred_check
          %p1909 = pneg %p355
        $region86: #{tpu_custom_call.1} parent=83 // pred_check_branch
          %1911 = sbr.rel (%p1909) target = $region88
        $region87: #{tpu_custom_call.1} parent=83 // pred_region
          %s1912 = sand.u32 %s340, 1
          %s1913 = scalar_lea.sflag [#allocation3], %s1912
          %s1914 = sand.u32 %s340, 1
          %s1915 = smul.addr %s1914, 8
          %s1916 = scalar_lea.vmem [#allocation2], %s1915
          %1917 = dma.done %s1913, 128
        $region88: #{tpu_custom_call.1} parent=83 // pred_fallthru
          _
        // Predicated region
        $region89: #{tpu_custom_call.1} parent=83 // pred_check
          %p1918 = pneg %p381
        $region90: #{tpu_custom_call.1} parent=83 // pred_check_branch
          %1920 = sbr.rel (%p1918) target = $region92
        $region91: #{tpu_custom_call.1} parent=83 // pred_region
          %s1921 = sand.u32 %s366, 1
          %s1922 = scalar_lea.sflag [#allocation5], %s1921
          %s1923 = sand.u32 %s366, 1
          %s1924 = scalar_lea.vmem [#allocation4], %s1923
          %1925 = dma.done %s1922, 16
        $region92: #{tpu_custom_call.1} parent=83 // pred_fallthru
          _
      $region84: #{tpu_custom_call.1} parent=5 // pred_fallthru
        _
    $region6: #{tpu_custom_call.1} parent=1 // loop_footer
      %s30 = sadd.s32 1, %s26
    $region7: #{tpu_custom_call.1} parent=1 // loop_footer_branch
      %25 = sbr.rel target = $region3
    $region8: #{tpu_custom_call.1} parent=1 // loop_exit
      _
    %1926 = vsyncpa [#allocation3], 1
    %s1927 = scalar_lea.sflag [#allocation3], 1
    %1928 = vsyncpa %s1927, 1
    %1929 = vsyncpa [#allocation5], 1
    %s1930 = scalar_lea.sflag [#allocation5], 1
    %1931 = vsyncpa %s1930, 1

</llo_original>
